<compile_context>
chip_gen: v6e
topology: v6e:2x2x1
jax: 0.10.0
libtpu: 0.0.40
codegen_flags: <defaults>
</compile_context>

<pallas_src>
import math
import jax
import jax.numpy as jnp
from jax.experimental import pallas as pl
from jax.experimental.pallas import tpu as pltpu  # TPU backend assumed

# ---- scaled-down BERT-like config (bert-base uses H=768, 12 heads, 12 layers) ----
BATCH = 2
SEQ_LEN = 8
HIDDEN = 32
NUM_HEADS = 2
HEAD_DIM = HIDDEN // NUM_HEADS
FFN = 64
NUM_LAYERS = 2
VOCAB = 50
TYPE_VOCAB = 2
N_SENTIMENTS = 3
HEAD_HIDDEN = SEQ_LEN * 4          # linear1 out features (seq_len * 4)
LN_EPS = 1e-12

# vec-slab row layout, one (8,128) f32 tile per block:
#   block l in [0, NUM_LAYERS):
#     row 0 [0:3H]  bq|bk|bv      row 1 [0:H]  bo
#     row 2 [0:H]   attn-LN gamma row 3 [0:H]  attn-LN beta
#     row 4 [0:FFN] bf1           row 5 [0:H]  bf2
#     row 6 [0:H]   ffn-LN gamma  row 7 [0:H]  ffn-LN beta
#   block NUM_LAYERS:
#     row 0 emb-LN gamma, row 1 emb-LN beta,
#     row 2 classifier b1 (HEAD_HIDDEN), row 3 [0:N_SENTIMENTS] classifier b2


def _layernorm(x, g, b, eps=LN_EPS):
    mu = jnp.mean(x, axis=-1, keepdims=True)
    var = jnp.mean((x - mu) ** 2, axis=-1, keepdims=True)
    return (x - mu) * jax.lax.rsqrt(var + eps) * g + b


# ---------------------------------------------------------------------------
# Single fused Pallas kernel: embedding LN + all encoder layers + class head.
# ---------------------------------------------------------------------------
def fused_model_kernel(x_ref, mask_ref, vec_ref, wattn_ref, wffn_ref, whead_ref, o_ref):
    B, S, H, HD, NH = BATCH, SEQ_LEN, HIDDEN, HEAD_DIM, NUM_HEADS
    scale = 1.0 / math.sqrt(HD)

    vtail = vec_ref[NUM_LAYERS]                                   # (8,128) f32
    # Embedding LayerNorm on the lane-dense (B*S, H) activation slab.
    x2 = _layernorm(x_ref[...], vtail[0:1, 0:H], vtail[1:2, 0:H])

    # Additive attention-mask bias, broadcast once (hoisted out of all loops) and
    # replicated per head; folded-head batch order is head-major [h0b0,h0b1,h1b0,h1b1].
    mask_full = jnp.broadcast_to(mask_ref[...], (B, S, S))
    mask_bh = jnp.concatenate([mask_full] * NH, axis=0)           # (NH*B, S, S)

    def split_heads(t):                                           # (B,S,H) -> (NH*B,S,HD)
        return jnp.concatenate([t[:, :, h * HD:(h + 1) * HD] for h in range(NH)], axis=0)

    # ---- transformer encoder: statically unrolled over stacked layer weights ----
    for l in range(NUM_LAYERS):
        vec = vec_ref[l]                                          # (8,128) f32 bias/LN slab
        w_attn = wattn_ref[l]                                     # (H,4H) bf16 = [Wq|Wk|Wv|Wo]
        w_ffn = wffn_ref[l]                                       # (H+FFN,FFN) bf16 = [Wf1 ; Wf2|pad]

        # Fused QKV projection: ONE (B*S,H)@(H,3H) MXU op, one bias add.
        qkv = jnp.dot(x2.astype(jnp.bfloat16), w_attn[:, 0:3 * H],
                      preferred_element_type=jnp.float32) + vec[0:1, 0:3 * H]
        q3 = (qkv[:, 0:H] * scale).reshape(B, S, H)               # fold 1/sqrt(d) into Q
        k3 = qkv[:, H:2 * H].reshape(B, S, H)
        v3 = qkv[:, 2 * H:3 * H].reshape(B, S, H)

        # Both heads at once: heads folded into the batch dim, context kept in vregs.
        q_bh = split_heads(q3).astype(jnp.bfloat16)
        k_bh = split_heads(k3).astype(jnp.bfloat16)
        v_bh = split_heads(v3).astype(jnp.bfloat16)
        scores = jnp.einsum('bqd,bkd->bqk', q_bh, k_bh,
                            preferred_element_type=jnp.float32) + mask_bh
        m = jnp.max(scores, axis=-1, keepdims=True)
        e = jnp.exp(scores - m)
        # approx reciprocal (EUP) here; exact division kept for the model-output softmax
        p = e * pl.reciprocal(jnp.sum(e, axis=-1, keepdims=True), approx=True)
        ctx_bh = jnp.einsum('bqk,bkd->bqd', p.astype(jnp.bfloat16), v_bh,
                            preferred_element_type=jnp.float32)   # (NH*B,S,HD) f32

        # Output projection without re-concatenating heads along lanes:
        #   [ctx_h0 | ctx_h1] @ Wo == sum_h ctx_h @ Wo[h*HD:(h+1)*HD, :]
        wo = w_attn[:, 3 * H:4 * H]
        attn2 = vec[1:2, 0:H]                                     # bo
        for h in range(NH):
            ctx_h = ctx_bh[h * B:(h + 1) * B].reshape(B * S, HD).astype(jnp.bfloat16)
            attn2 = attn2 + jnp.dot(ctx_h, wo[h * HD:(h + 1) * HD, :],
                                    preferred_element_type=jnp.float32)
        h1 = _layernorm(x2 + attn2, vec[2:3, 0:H], vec[3:4, 0:H])

        # Feed-forward.
        ff = jnp.dot(h1.astype(jnp.bfloat16), w_ffn[0:H, :],
                     preferred_element_type=jnp.float32) + vec[4:5, 0:FFN]
        # TODO(synk): HF bert-base uses exact (erf) GELU; tanh approximation used here.
        ff = jax.nn.gelu(ff, approximate=True)
        ff = jnp.dot(ff.astype(jnp.bfloat16), w_ffn[H:H + FFN, 0:H],
                     preferred_element_type=jnp.float32) + vec[5:6, 0:H]
        x2 = _layernorm(h1 + ff, vec[6:7, 0:H], vec[7:8, 0:H])

    # ---- classification head epilogue (dropouts are identity in eval mode) ----
    # nn.Flatten realized as a lane concatenation of the S per-position rows
    # (column order s*H + h, matching PyTorch), then ONE 256-deep contraction.
    x3 = x2.reshape(B, S, H)
    x_flat = jnp.concatenate([x3[:, s, :] for s in range(S)], axis=-1)   # (B, S*H)
    hh = jnp.dot(x_flat.astype(jnp.bfloat16), whead_ref[0:S * H, :],
                 preferred_element_type=jnp.float32) + vtail[2:3, 0:HEAD_HIDDEN]
    logits = jnp.dot(hh.astype(jnp.bfloat16),
                     whead_ref[S * H:S * H + HEAD_HIDDEN, 0:N_SENTIMENTS],
                     preferred_element_type=jnp.float32) + vtail[3:4, 0:N_SENTIMENTS]

    # Output softmax (exact normalization so probabilities sum to 1).
    m = jnp.max(logits, axis=-1, keepdims=True)
    e = jnp.exp(logits - m)
    o_ref[...] = e / jnp.sum(e, axis=-1, keepdims=True)


# ---------------------------------------------------------------------------
# Deterministic parameter initialization (synthetic, no checkpoint load).
# ---------------------------------------------------------------------------
def init_params(key):
    keys = iter(jax.random.split(key, 64))

    def w(shape, s=0.02):
        return jax.random.normal(next(keys), shape, jnp.float32) * s

    layers = []
    for _ in range(NUM_LAYERS):
        layers.append({
            "wq": w((HIDDEN, HIDDEN)), "bq": w((HIDDEN,)),
            "wk": w((HIDDEN, HIDDEN)), "bk": w((HIDDEN,)),
            "wv": w((HIDDEN, HIDDEN)), "bv": w((HIDDEN,)),
            "wo": w((HIDDEN, HIDDEN)), "bo": w((HIDDEN,)),
            "g1": jnp.ones((HIDDEN,), jnp.float32), "b1": jnp.zeros((HIDDEN,), jnp.float32),
            "wf1": w((HIDDEN, FFN)), "bf1": w((FFN,)),
            "wf2": w((FFN, HIDDEN)), "bf2": w((HIDDEN,)),
            "g2": jnp.ones((HIDDEN,), jnp.float32), "b2": jnp.zeros((HIDDEN,), jnp.float32),
        })
    return {
        "word_emb": w((VOCAB, HIDDEN)),
        "pos_emb": w((SEQ_LEN, HIDDEN)),
        "type_emb": w((TYPE_VOCAB, HIDDEN)),
        "emb_g": jnp.ones((HIDDEN,), jnp.float32),
        "emb_b": jnp.zeros((HIDDEN,), jnp.float32),
        "layers": layers,
        # classification head: linear1 (S*H -> S*4), linear2 (S*4 -> n_sentiments)
        "hw1": w((SEQ_LEN * HIDDEN, HEAD_HIDDEN)), "hb1": w((HEAD_HIDDEN,)),
        "hw2": w((HEAD_HIDDEN, N_SENTIMENTS)), "hb2": w((N_SENTIMENTS,)),
    }


def pack_params(p):
    """Host-side packing of all parameters into a few DMA-friendly slabs."""
    L, H = NUM_LAYERS, HIDDEN
    vec = jnp.zeros((L + 1, 8, 128), jnp.float32)
    w_attn, w_ffn = [], []
    for l, lyr in enumerate(p["layers"]):
        vec = vec.at[l, 0, 0:3 * H].set(jnp.concatenate([lyr["bq"], lyr["bk"], lyr["bv"]]))
        vec = vec.at[l, 1, 0:H].set(lyr["bo"])
        vec = vec.at[l, 2, 0:H].set(lyr["g1"])
        vec = vec.at[l, 3, 0:H].set(lyr["b1"])
        vec = vec.at[l, 4, 0:FFN].set(lyr["bf1"])
        vec = vec.at[l, 5, 0:H].set(lyr["bf2"])
        vec = vec.at[l, 6, 0:H].set(lyr["g2"])
        vec = vec.at[l, 7, 0:H].set(lyr["b2"])
        w_attn.append(jnp.concatenate([lyr["wq"], lyr["wk"], lyr["wv"], lyr["wo"]], axis=1))
        wf = jnp.zeros((H + FFN, FFN), jnp.float32)
        wf = wf.at[0:H, :].set(lyr["wf1"])
        wf = wf.at[H:H + FFN, 0:H].set(lyr["wf2"])
        w_ffn.append(wf)
    vec = vec.at[L, 0, 0:H].set(p["emb_g"])
    vec = vec.at[L, 1, 0:H].set(p["emb_b"])
    vec = vec.at[L, 2, 0:HEAD_HIDDEN].set(p["hb1"])
    vec = vec.at[L, 3, 0:N_SENTIMENTS].set(p["hb2"])

    w_head = jnp.zeros((SEQ_LEN * HIDDEN + HEAD_HIDDEN, HEAD_HIDDEN), jnp.float32)
    w_head = w_head.at[0:SEQ_LEN * HIDDEN, :].set(p["hw1"])
    w_head = w_head.at[SEQ_LEN * HIDDEN:, 0:N_SENTIMENTS].set(p["hw2"])

    return {
        "word_emb": p["word_emb"], "pos_emb": p["pos_emb"], "type_emb": p["type_emb"],
        "vec": vec,                                              # f32 (L+1, 8, 128)
        "w_attn": jnp.stack(w_attn).astype(jnp.bfloat16),        # (L, H, 4H)
        "w_ffn": jnp.stack(w_ffn).astype(jnp.bfloat16),          # (L, H+FFN, FFN)
        "w_head": w_head.astype(jnp.bfloat16),                   # (S*H + 4S, 4S)
    }


# ---------------------------------------------------------------------------
# Full forward pass: HateSpeechBERT.forward(input_ids, attention_mask, token_type_ids)
# ---------------------------------------------------------------------------
def hate_speech_bert_forward(packed, input_ids, attention_mask, token_type_ids):
    # Data-dependent embedding gathers stay in plain JAX (glue); everything else
    # (embedding LN, all encoder layers, classification head) runs in ONE Pallas kernel.
    emb = (packed["word_emb"][input_ids]
           + packed["pos_emb"][None, :, :]
           + packed["type_emb"][token_type_ids]).astype(jnp.float32)
    emb2 = emb.reshape(BATCH * SEQ_LEN, HIDDEN)

    # BERT-style additive mask bias: 0 where attended, -1e9 where masked.
    mask_bias = ((1.0 - attention_mask.astype(jnp.float32)) * -1e9
                 ).reshape(BATCH, 1, SEQ_LEN)

    return pl.pallas_call(
        fused_model_kernel,
        out_shape=jax.ShapeDtypeStruct((BATCH, N_SENTIMENTS), jnp.float32),
    )(emb2, mask_bias, packed["vec"], packed["w_attn"], packed["w_ffn"], packed["w_head"])


if __name__ == "__main__":
    key = jax.random.PRNGKey(0)
    k_params, k_ids = jax.random.split(key)

    params = init_params(k_params)
    packed = pack_params(params)

    input_ids = jax.random.randint(k_ids, (BATCH, SEQ_LEN), 0, VOCAB, dtype=jnp.int32)
    attention_mask = jnp.ones((BATCH, SEQ_LEN), jnp.int32).at[1, -2:].set(0)
    token_type_ids = jnp.zeros((BATCH, SEQ_LEN), jnp.int32)

    probs = hate_speech_bert_forward(packed, input_ids, attention_mask, token_type_ids)
    probs = jax.block_until_ready(probs)

    assert probs.shape == (BATCH, N_SENTIMENTS)
    assert bool(jnp.all(jnp.isfinite(probs)))
    assert bool(jnp.allclose(jnp.sum(probs, axis=-1), 1.0, atol=1e-5))
    print("KERNEL_OK")
</pallas_src>

<mosaic_0001>
module attributes {stable_mosaic.version = 11 : i64} {
  func.func @fused_model_kernel(%arg0: memref<16x32xf32, #tpu.memory_space<vmem>>, %arg1: memref<2x1x8xf32, #tpu.memory_space<vmem>>, %arg2: memref<3x8x128xf32, #tpu.memory_space<vmem>>, %arg3: memref<2x32x128xbf16, #tpu.memory_space<vmem>>, %arg4: memref<2x96x64xbf16, #tpu.memory_space<vmem>>, %arg5: memref<288x32xbf16, #tpu.memory_space<vmem>>, %arg6: memref<2x3xf32, #tpu.memory_space<vmem>>) attributes {dimension_semantics = [], scalar_prefetch = 0 : i64, scratch_operands = 0 : i64, tpu.core_type = #tpu.core_type<tc>} {
    %c2 = arith.constant 2 : index
    %c0 = arith.constant 0 : index
    %c0_0 = arith.constant 0 : index
    %0 = vector.load %arg2[%c2, %c0, %c0_0] : memref<3x8x128xf32, #tpu.memory_space<vmem>>, vector<1x8x128xf32>
    %1 = vector.shape_cast %0 : vector<1x8x128xf32> to vector<8x128xf32>
    %c0_1 = arith.constant 0 : index
    %c0_2 = arith.constant 0 : index
    %2 = vector.load %arg0[%c0_1, %c0_2] : memref<16x32xf32, #tpu.memory_space<vmem>>, vector<16x32xf32>
    %3 = vector.extract_strided_slice %1 {offsets = [0, 0], sizes = [1, 32], strides = [1, 1]} : vector<8x128xf32> to vector<1x32xf32>
    %4 = vector.extract_strided_slice %1 {offsets = [1, 0], sizes = [1, 32], strides = [1, 1]} : vector<8x128xf32> to vector<1x32xf32>
    %cst = arith.constant dense<0.000000e+00> : vector<16xf32>
    %5 = vector.multi_reduction <add>, %2, %cst [1] : vector<16x32xf32> to vector<16xf32>
    %6 = vector.shape_cast %5 : vector<16xf32> to vector<16x1xf32>
    %cst_3 = arith.constant 3.200000e+01 : f32
    %7 = vector.broadcast %cst_3 : f32 to vector<16x1xf32>
    %8 = arith.divf %6, %7 : vector<16x1xf32>
    %9 = vector.broadcast %8 : vector<16x1xf32> to vector<16x32xf32>
    %10 = arith.subf %2, %9 : vector<16x32xf32>
    %11 = arith.mulf %10, %10 : vector<16x32xf32>
    %cst_4 = arith.constant dense<0.000000e+00> : vector<16xf32>
    %12 = vector.multi_reduction <add>, %11, %cst_4 [1] : vector<16x32xf32> to vector<16xf32>
    %13 = vector.shape_cast %12 : vector<16xf32> to vector<16x1xf32>
    %cst_5 = arith.constant 3.200000e+01 : f32
    %14 = vector.broadcast %cst_5 : f32 to vector<16x1xf32>
    %15 = arith.divf %13, %14 : vector<16x1xf32>
    %16 = vector.broadcast %8 : vector<16x1xf32> to vector<16x32xf32>
    %17 = arith.subf %2, %16 : vector<16x32xf32>
    %cst_6 = arith.constant 9.99999996E-13 : f32
    %18 = vector.broadcast %cst_6 : f32 to vector<16x1xf32>
    %19 = arith.addf %15, %18 : vector<16x1xf32>
    %20 = math.rsqrt %19 : vector<16x1xf32>
    %21 = vector.broadcast %20 : vector<16x1xf32> to vector<16x32xf32>
    %22 = arith.mulf %17, %21 : vector<16x32xf32>
    %23 = vector.broadcast %3 : vector<1x32xf32> to vector<16x32xf32>
    %24 = arith.mulf %22, %23 : vector<16x32xf32>
    %25 = vector.broadcast %4 : vector<1x32xf32> to vector<16x32xf32>
    %26 = arith.addf %24, %25 : vector<16x32xf32>
    %c0_7 = arith.constant 0 : index
    %c0_8 = arith.constant 0 : index
    %c0_9 = arith.constant 0 : index
    %27 = vector.load %arg1[%c0_7, %c0_8, %c0_9] : memref<2x1x8xf32, #tpu.memory_space<vmem>>, vector<2x1x8xf32>
    %28 = vector.shape_cast %27 : vector<2x1x8xf32> to vector<2x1x8xf32>
    %29 = vector.broadcast %28 : vector<2x1x8xf32> to vector<2x8x8xf32>
    %30 = tpu.concatenate %29, %29 in 0 : vector<2x8x8xf32>, vector<2x8x8xf32> -> vector<4x8x8xf32>
    %c0_10 = arith.constant 0 : index
    %c0_11 = arith.constant 0 : index
    %c0_12 = arith.constant 0 : index
    %31 = vector.load %arg2[%c0_10, %c0_11, %c0_12] : memref<3x8x128xf32, #tpu.memory_space<vmem>>, vector<1x8x128xf32>
    %32 = vector.shape_cast %31 : vector<1x8x128xf32> to vector<8x128xf32>
    %c0_13 = arith.constant 0 : index
    %c0_14 = arith.constant 0 : index
    %c0_15 = arith.constant 0 : index
    %33 = vector.load %arg3[%c0_13, %c0_14, %c0_15] : memref<2x32x128xbf16, #tpu.memory_space<vmem>>, vector<1x32x128xbf16>
    %34 = vector.shape_cast %33 : vector<1x32x128xbf16> to vector<32x128xbf16>
    %c0_16 = arith.constant 0 : index
    %c0_17 = arith.constant 0 : index
    %c0_18 = arith.constant 0 : index
    %35 = vector.load %arg4[%c0_16, %c0_17, %c0_18] : memref<2x96x64xbf16, #tpu.memory_space<vmem>>, vector<1x96x64xbf16>
    %36 = vector.shape_cast %35 : vector<1x96x64xbf16> to vector<96x64xbf16>
    %37 = arith.truncf %26 : vector<16x32xf32> to vector<16x32xbf16>
    %38 = vector.extract_strided_slice %34 {offsets = [0, 0], sizes = [32, 96], strides = [1, 1]} : vector<32x128xbf16> to vector<32x96xbf16>
    %cst_19 = arith.constant dense<0.000000e+00> : vector<16x96xf32>
    %39 = tpu.matmul %37, %38, %cst_19 {dimension_numbers = #tpu.dot_dimension_numbers<[1], [0], [0], [1], [0, 0, 1, 1], [], []>} : vector<16x32xbf16>, vector<32x96xbf16>, vector<16x96xf32> -> vector<16x96xf32>
    %40 = vector.extract_strided_slice %32 {offsets = [0, 0], sizes = [1, 96], strides = [1, 1]} : vector<8x128xf32> to vector<1x96xf32>
    %41 = vector.broadcast %40 : vector<1x96xf32> to vector<16x96xf32>
    %42 = arith.addf %39, %41 : vector<16x96xf32>
    %43 = vector.extract_strided_slice %42 {offsets = [0, 0], sizes = [16, 32], strides = [1, 1]} : vector<16x96xf32> to vector<16x32xf32>
    %cst_20 = arith.constant 2.500000e-01 : f32
    %44 = vector.broadcast %cst_20 : f32 to vector<16x32xf32>
    %45 = arith.mulf %43, %44 : vector<16x32xf32>
    %46 = vector.shape_cast %45 : vector<16x32xf32> to vector<2x8x32xf32>
    %47 = vector.extract_strided_slice %42 {offsets = [0, 32], sizes = [16, 32], strides = [1, 1]} : vector<16x96xf32> to vector<16x32xf32>
    %48 = vector.shape_cast %47 : vector<16x32xf32> to vector<2x8x32xf32>
    %49 = vector.extract_strided_slice %42 {offsets = [0, 64], sizes = [16, 32], strides = [1, 1]} : vector<16x96xf32> to vector<16x32xf32>
    %50 = vector.shape_cast %49 : vector<16x32xf32> to vector<2x8x32xf32>
    %51 = vector.extract_strided_slice %46 {offsets = [0, 0, 0], sizes = [2, 8, 16], strides = [1, 1, 1]} : vector<2x8x32xf32> to vector<2x8x16xf32>
    %52 = vector.extract_strided_slice %46 {offsets = [0, 0, 16], sizes = [2, 8, 16], strides = [1, 1, 1]} : vector<2x8x32xf32> to vector<2x8x16xf32>
    %53 = tpu.concatenate %51, %52 in 0 : vector<2x8x16xf32>, vector<2x8x16xf32> -> vector<4x8x16xf32>
    %54 = arith.truncf %53 : vector<4x8x16xf32> to vector<4x8x16xbf16>
    %55 = vector.extract_strided_slice %48 {offsets = [0, 0, 0], sizes = [2, 8, 16], strides = [1, 1, 1]} : vector<2x8x32xf32> to vector<2x8x16xf32>
    %56 = vector.extract_strided_slice %48 {offsets = [0, 0, 16], sizes = [2, 8, 16], strides = [1, 1, 1]} : vector<2x8x32xf32> to vector<2x8x16xf32>
    %57 = tpu.concatenate %55, %56 in 0 : vector<2x8x16xf32>, vector<2x8x16xf32> -> vector<4x8x16xf32>
    %58 = arith.truncf %57 : vector<4x8x16xf32> to vector<4x8x16xbf16>
    %59 = vector.extract_strided_slice %50 {offsets = [0, 0, 0], sizes = [2, 8, 16], strides = [1, 1, 1]} : vector<2x8x32xf32> to vector<2x8x16xf32>
    %60 = vector.extract_strided_slice %50 {offsets = [0, 0, 16], sizes = [2, 8, 16], strides = [1, 1, 1]} : vector<2x8x32xf32> to vector<2x8x16xf32>
    %61 = tpu.concatenate %59, %60 in 0 : vector<2x8x16xf32>, vector<2x8x16xf32> -> vector<4x8x16xf32>
    %62 = arith.truncf %61 : vector<4x8x16xf32> to vector<4x8x16xbf16>
    "tpu.trace_start"() <{level = 10 : i32, message = "bqd,bkd->bqk"}> : () -> ()
    %cst_21 = arith.constant dense<0.000000e+00> : vector<4x8x8xf32>
    %63 = tpu.matmul %54, %58, %cst_21 {dimension_numbers = #tpu.dot_dimension_numbers<[2], [2], [1], [1], [0, 0, 0, 1, 1, 1], [0], [0]>} : vector<4x8x16xbf16>, vector<4x8x16xbf16>, vector<4x8x8xf32> -> vector<4x8x8xf32>
    "tpu.trace_stop"() : () -> ()
    %64 = arith.addf %63, %30 : vector<4x8x8xf32>
    %cst_22 = arith.constant dense<0xFF800000> : vector<4x8xf32>
    %65 = vector.multi_reduction <maximumf>, %64, %cst_22 [2] : vector<4x8x8xf32> to vector<4x8xf32>
    %66 = vector.shape_cast %65 : vector<4x8xf32> to vector<4x8x1xf32>
    %67 = vector.broadcast %66 : vector<4x8x1xf32> to vector<4x8x8xf32>
    %68 = arith.subf %64, %67 : vector<4x8x8xf32>
    %69 = math.exp %68 : vector<4x8x8xf32>
    %cst_23 = arith.constant dense<0.000000e+00> : vector<4x8xf32>
    %70 = vector.multi_reduction <add>, %69, %cst_23 [2] : vector<4x8x8xf32> to vector<4x8xf32>
    %71 = vector.shape_cast %70 : vector<4x8xf32> to vector<4x8x1xf32>
    %72 = tpu.reciprocal %71 {approx = true} : vector<4x8x1xf32> -> vector<4x8x1xf32>
    %73 = vector.broadcast %72 : vector<4x8x1xf32> to vector<4x8x8xf32>
    %74 = arith.mulf %69, %73 : vector<4x8x8xf32>
    %75 = arith.truncf %74 : vector<4x8x8xf32> to vector<4x8x8xbf16>
    "tpu.trace_start"() <{level = 10 : i32, message = "bqk,bkd->bqd"}> : () -> ()
    %cst_24 = arith.constant dense<0.000000e+00> : vector<4x8x16xf32>
    %76 = tpu.matmul %75, %62, %cst_24 {dimension_numbers = #tpu.dot_dimension_numbers<[2], [1], [1], [2], [0, 0, 0, 1, 1, 2], [0], [0]>} : vector<4x8x8xbf16>, vector<4x8x16xbf16>, vector<4x8x16xf32> -> vector<4x8x16xf32>
    "tpu.trace_stop"() : () -> ()
    %77 = vector.extract_strided_slice %34 {offsets = [0, 96], sizes = [32, 32], strides = [1, 1]} : vector<32x128xbf16> to vector<32x32xbf16>
    %78 = vector.extract_strided_slice %32 {offsets = [1, 0], sizes = [1, 32], strides = [1, 1]} : vector<8x128xf32> to vector<1x32xf32>
    %79 = vector.extract_strided_slice %76 {offsets = [0, 0, 0], sizes = [2, 8, 16], strides = [1, 1, 1]} : vector<4x8x16xf32> to vector<2x8x16xf32>
    %80 = vector.shape_cast %79 : vector<2x8x16xf32> to vector<16x16xf32>
    %81 = arith.truncf %80 : vector<16x16xf32> to vector<16x16xbf16>
    %82 = vector.extract_strided_slice %77 {offsets = [0, 0], sizes = [16, 32], strides = [1, 1]} : vector<32x32xbf16> to vector<16x32xbf16>
    %cst_25 = arith.constant dense<0.000000e+00> : vector<16x32xf32>
    %83 = tpu.matmul %81, %82, %cst_25 {dimension_numbers = #tpu.dot_dimension_numbers<[1], [0], [0], [1], [0, 0, 1, 1], [], []>} : vector<16x16xbf16>, vector<16x32xbf16>, vector<16x32xf32> -> vector<16x32xf32>
    %84 = vector.broadcast %78 : vector<1x32xf32> to vector<16x32xf32>
    %85 = arith.addf %84, %83 : vector<16x32xf32>
    %86 = vector.extract_strided_slice %76 {offsets = [2, 0, 0], sizes = [2, 8, 16], strides = [1, 1, 1]} : vector<4x8x16xf32> to vector<2x8x16xf32>
    %87 = vector.shape_cast %86 : vector<2x8x16xf32> to vector<16x16xf32>
    %88 = arith.truncf %87 : vector<16x16xf32> to vector<16x16xbf16>
    %89 = vector.extract_strided_slice %77 {offsets = [16, 0], sizes = [16, 32], strides = [1, 1]} : vector<32x32xbf16> to vector<16x32xbf16>
    %cst_26 = arith.constant dense<0.000000e+00> : vector<16x32xf32>
    %90 = tpu.matmul %88, %89, %cst_26 {dimension_numbers = #tpu.dot_dimension_numbers<[1], [0], [0], [1], [0, 0, 1, 1], [], []>} : vector<16x16xbf16>, vector<16x32xbf16>, vector<16x32xf32> -> vector<16x32xf32>
    %91 = arith.addf %85, %90 : vector<16x32xf32>
    %92 = arith.addf %26, %91 : vector<16x32xf32>
    %93 = vector.extract_strided_slice %32 {offsets = [2, 0], sizes = [1, 32], strides = [1, 1]} : vector<8x128xf32> to vector<1x32xf32>
    %94 = vector.extract_strided_slice %32 {offsets = [3, 0], sizes = [1, 32], strides = [1, 1]} : vector<8x128xf32> to vector<1x32xf32>
    %cst_27 = arith.constant dense<0.000000e+00> : vector<16xf32>
    %95 = vector.multi_reduction <add>, %92, %cst_27 [1] : vector<16x32xf32> to vector<16xf32>
    %96 = vector.shape_cast %95 : vector<16xf32> to vector<16x1xf32>
    %cst_28 = arith.constant 3.200000e+01 : f32
    %97 = vector.broadcast %cst_28 : f32 to vector<16x1xf32>
    %98 = arith.divf %96, %97 : vector<16x1xf32>
    %99 = vector.broadcast %98 : vector<16x1xf32> to vector<16x32xf32>
    %100 = arith.subf %92, %99 : vector<16x32xf32>
    %101 = arith.mulf %100, %100 : vector<16x32xf32>
    %cst_29 = arith.constant dense<0.000000e+00> : vector<16xf32>
    %102 = vector.multi_reduction <add>, %101, %cst_29 [1] : vector<16x32xf32> to vector<16xf32>
    %103 = vector.shape_cast %102 : vector<16xf32> to vector<16x1xf32>
    %cst_30 = arith.constant 3.200000e+01 : f32
    %104 = vector.broadcast %cst_30 : f32 to vector<16x1xf32>
    %105 = arith.divf %103, %104 : vector<16x1xf32>
    %106 = vector.broadcast %98 : vector<16x1xf32> to vector<16x32xf32>
    %107 = arith.subf %92, %106 : vector<16x32xf32>
    %cst_31 = arith.constant 9.99999996E-13 : f32
    %108 = vector.broadcast %cst_31 : f32 to vector<16x1xf32>
    %109 = arith.addf %105, %108 : vector<16x1xf32>
    %110 = math.rsqrt %109 : vector<16x1xf32>
    %111 = vector.broadcast %110 : vector<16x1xf32> to vector<16x32xf32>
    %112 = arith.mulf %107, %111 : vector<16x32xf32>
    %113 = vector.broadcast %93 : vector<1x32xf32> to vector<16x32xf32>
    %114 = arith.mulf %112, %113 : vector<16x32xf32>
    %115 = vector.broadcast %94 : vector<1x32xf32> to vector<16x32xf32>
    %116 = arith.addf %114, %115 : vector<16x32xf32>
    %117 = arith.truncf %116 : vector<16x32xf32> to vector<16x32xbf16>
    %118 = vector.extract_strided_slice %36 {offsets = [0, 0], sizes = [32, 64], strides = [1, 1]} : vector<96x64xbf16> to vector<32x64xbf16>
    %cst_32 = arith.constant dense<0.000000e+00> : vector<16x64xf32>
    %119 = tpu.matmul %117, %118, %cst_32 {dimension_numbers = #tpu.dot_dimension_numbers<[1], [0], [0], [1], [0, 0, 1, 1], [], []>} : vector<16x32xbf16>, vector<32x64xbf16>, vector<16x64xf32> -> vector<16x64xf32>
    %120 = vector.extract_strided_slice %32 {offsets = [4, 0], sizes = [1, 64], strides = [1, 1]} : vector<8x128xf32> to vector<1x64xf32>
    %121 = vector.broadcast %120 : vector<1x64xf32> to vector<16x64xf32>
    %122 = arith.addf %119, %121 : vector<16x64xf32>
    %123 = arith.mulf %122, %122 : vector<16x64xf32>
    %124 = arith.mulf %122, %123 : vector<16x64xf32>
    %cst_33 = arith.constant 4.471500e-02 : f32
    %125 = vector.broadcast %cst_33 : f32 to vector<16x64xf32>
    %126 = arith.mulf %125, %124 : vector<16x64xf32>
    %127 = arith.addf %122, %126 : vector<16x64xf32>
    %cst_34 = arith.constant 0.797884583 : f32
    %128 = vector.broadcast %cst_34 : f32 to vector<16x64xf32>
    %129 = arith.mulf %128, %127 : vector<16x64xf32>
    %130 = math.tanh %129 : vector<16x64xf32>
    %cst_35 = arith.constant 1.000000e+00 : f32
    %131 = vector.broadcast %cst_35 : f32 to vector<16x64xf32>
    %132 = arith.addf %131, %130 : vector<16x64xf32>
    %cst_36 = arith.constant 5.000000e-01 : f32
    %133 = vector.broadcast %cst_36 : f32 to vector<16x64xf32>
    %134 = arith.mulf %133, %132 : vector<16x64xf32>
    %135 = arith.mulf %122, %134 : vector<16x64xf32>
    %136 = arith.truncf %135 : vector<16x64xf32> to vector<16x64xbf16>
    %137 = vector.extract_strided_slice %36 {offsets = [32, 0], sizes = [64, 32], strides = [1, 1]} : vector<96x64xbf16> to vector<64x32xbf16>
    %cst_37 = arith.constant dense<0.000000e+00> : vector<16x32xf32>
    %138 = tpu.matmul %136, %137, %cst_37 {dimension_numbers = #tpu.dot_dimension_numbers<[1], [0], [0], [1], [0, 0, 1, 1], [], []>} : vector<16x64xbf16>, vector<64x32xbf16>, vector<16x32xf32> -> vector<16x32xf32>
    %139 = vector.extract_strided_slice %32 {offsets = [5, 0], sizes = [1, 32], strides = [1, 1]} : vector<8x128xf32> to vector<1x32xf32>
    %140 = vector.broadcast %139 : vector<1x32xf32> to vector<16x32xf32>
    %141 = arith.addf %138, %140 : vector<16x32xf32>
    %142 = arith.addf %116, %141 : vector<16x32xf32>
    %143 = vector.extract_strided_slice %32 {offsets = [6, 0], sizes = [1, 32], strides = [1, 1]} : vector<8x128xf32> to vector<1x32xf32>
    %144 = vector.extract_strided_slice %32 {offsets = [7, 0], sizes = [1, 32], strides = [1, 1]} : vector<8x128xf32> to vector<1x32xf32>
    %cst_38 = arith.constant dense<0.000000e+00> : vector<16xf32>
    %145 = vector.multi_reduction <add>, %142, %cst_38 [1] : vector<16x32xf32> to vector<16xf32>
    %146 = vector.shape_cast %145 : vector<16xf32> to vector<16x1xf32>
    %cst_39 = arith.constant 3.200000e+01 : f32
    %147 = vector.broadcast %cst_39 : f32 to vector<16x1xf32>
    %148 = arith.divf %146, %147 : vector<16x1xf32>
    %149 = vector.broadcast %148 : vector<16x1xf32> to vector<16x32xf32>
    %150 = arith.subf %142, %149 : vector<16x32xf32>
    %151 = arith.mulf %150, %150 : vector<16x32xf32>
    %cst_40 = arith.constant dense<0.000000e+00> : vector<16xf32>
    %152 = vector.multi_reduction <add>, %151, %cst_40 [1] : vector<16x32xf32> to vector<16xf32>
    %153 = vector.shape_cast %152 : vector<16xf32> to vector<16x1xf32>
    %cst_41 = arith.constant 3.200000e+01 : f32
    %154 = vector.broadcast %cst_41 : f32 to vector<16x1xf32>
    %155 = arith.divf %153, %154 : vector<16x1xf32>
    %156 = vector.broadcast %148 : vector<16x1xf32> to vector<16x32xf32>
    %157 = arith.subf %142, %156 : vector<16x32xf32>
    %cst_42 = arith.constant 9.99999996E-13 : f32
    %158 = vector.broadcast %cst_42 : f32 to vector<16x1xf32>
    %159 = arith.addf %155, %158 : vector<16x1xf32>
    %160 = math.rsqrt %159 : vector<16x1xf32>
    %161 = vector.broadcast %160 : vector<16x1xf32> to vector<16x32xf32>
    %162 = arith.mulf %157, %161 : vector<16x32xf32>
    %163 = vector.broadcast %143 : vector<1x32xf32> to vector<16x32xf32>
    %164 = arith.mulf %162, %163 : vector<16x32xf32>
    %165 = vector.broadcast %144 : vector<1x32xf32> to vector<16x32xf32>
    %166 = arith.addf %164, %165 : vector<16x32xf32>
    %c1 = arith.constant 1 : index
    %c0_43 = arith.constant 0 : index
    %c0_44 = arith.constant 0 : index
    %167 = vector.load %arg2[%c1, %c0_43, %c0_44] : memref<3x8x128xf32, #tpu.memory_space<vmem>>, vector<1x8x128xf32>
    %168 = vector.shape_cast %167 : vector<1x8x128xf32> to vector<8x128xf32>
    %c1_45 = arith.constant 1 : index
    %c0_46 = arith.constant 0 : index
    %c0_47 = arith.constant 0 : index
    %169 = vector.load %arg3[%c1_45, %c0_46, %c0_47] : memref<2x32x128xbf16, #tpu.memory_space<vmem>>, vector<1x32x128xbf16>
    %170 = vector.shape_cast %169 : vector<1x32x128xbf16> to vector<32x128xbf16>
    %c1_48 = arith.constant 1 : index
    %c0_49 = arith.constant 0 : index
    %c0_50 = arith.constant 0 : index
    %171 = vector.load %arg4[%c1_48, %c0_49, %c0_50] : memref<2x96x64xbf16, #tpu.memory_space<vmem>>, vector<1x96x64xbf16>
    %172 = vector.shape_cast %171 : vector<1x96x64xbf16> to vector<96x64xbf16>
    %173 = arith.truncf %166 : vector<16x32xf32> to vector<16x32xbf16>
    %174 = vector.extract_strided_slice %170 {offsets = [0, 0], sizes = [32, 96], strides = [1, 1]} : vector<32x128xbf16> to vector<32x96xbf16>
    %cst_51 = arith.constant dense<0.000000e+00> : vector<16x96xf32>
    %175 = tpu.matmul %173, %174, %cst_51 {dimension_numbers = #tpu.dot_dimension_numbers<[1], [0], [0], [1], [0, 0, 1, 1], [], []>} : vector<16x32xbf16>, vector<32x96xbf16>, vector<16x96xf32> -> vector<16x96xf32>
    %176 = vector.extract_strided_slice %168 {offsets = [0, 0], sizes = [1, 96], strides = [1, 1]} : vector<8x128xf32> to vector<1x96xf32>
    %177 = vector.broadcast %176 : vector<1x96xf32> to vector<16x96xf32>
    %178 = arith.addf %175, %177 : vector<16x96xf32>
    %179 = vector.extract_strided_slice %178 {offsets = [0, 0], sizes = [16, 32], strides = [1, 1]} : vector<16x96xf32> to vector<16x32xf32>
    %cst_52 = arith.constant 2.500000e-01 : f32
    %180 = vector.broadcast %cst_52 : f32 to vector<16x32xf32>
    %181 = arith.mulf %179, %180 : vector<16x32xf32>
    %182 = vector.shape_cast %181 : vector<16x32xf32> to vector<2x8x32xf32>
    %183 = vector.extract_strided_slice %178 {offsets = [0, 32], sizes = [16, 32], strides = [1, 1]} : vector<16x96xf32> to vector<16x32xf32>
    %184 = vector.shape_cast %183 : vector<16x32xf32> to vector<2x8x32xf32>
    %185 = vector.extract_strided_slice %178 {offsets = [0, 64], sizes = [16, 32], strides = [1, 1]} : vector<16x96xf32> to vector<16x32xf32>
    %186 = vector.shape_cast %185 : vector<16x32xf32> to vector<2x8x32xf32>
    %187 = vector.extract_strided_slice %182 {offsets = [0, 0, 0], sizes = [2, 8, 16], strides = [1, 1, 1]} : vector<2x8x32xf32> to vector<2x8x16xf32>
    %188 = vector.extract_strided_slice %182 {offsets = [0, 0, 16], sizes = [2, 8, 16], strides = [1, 1, 1]} : vector<2x8x32xf32> to vector<2x8x16xf32>
    %189 = tpu.concatenate %187, %188 in 0 : vector<2x8x16xf32>, vector<2x8x16xf32> -> vector<4x8x16xf32>
    %190 = arith.truncf %189 : vector<4x8x16xf32> to vector<4x8x16xbf16>
    %191 = vector.extract_strided_slice %184 {offsets = [0, 0, 0], sizes = [2, 8, 16], strides = [1, 1, 1]} : vector<2x8x32xf32> to vector<2x8x16xf32>
    %192 = vector.extract_strided_slice %184 {offsets = [0, 0, 16], sizes = [2, 8, 16], strides = [1, 1, 1]} : vector<2x8x32xf32> to vector<2x8x16xf32>
    %193 = tpu.concatenate %191, %192 in 0 : vector<2x8x16xf32>, vector<2x8x16xf32> -> vector<4x8x16xf32>
    %194 = arith.truncf %193 : vector<4x8x16xf32> to vector<4x8x16xbf16>
    %195 = vector.extract_strided_slice %186 {offsets = [0, 0, 0], sizes = [2, 8, 16], strides = [1, 1, 1]} : vector<2x8x32xf32> to vector<2x8x16xf32>
    %196 = vector.extract_strided_slice %186 {offsets = [0, 0, 16], sizes = [2, 8, 16], strides = [1, 1, 1]} : vector<2x8x32xf32> to vector<2x8x16xf32>
    %197 = tpu.concatenate %195, %196 in 0 : vector<2x8x16xf32>, vector<2x8x16xf32> -> vector<4x8x16xf32>
    %198 = arith.truncf %197 : vector<4x8x16xf32> to vector<4x8x16xbf16>
    "tpu.trace_start"() <{level = 10 : i32, message = "bqd,bkd->bqk"}> : () -> ()
    %cst_53 = arith.constant dense<0.000000e+00> : vector<4x8x8xf32>
    %199 = tpu.matmul %190, %194, %cst_53 {dimension_numbers = #tpu.dot_dimension_numbers<[2], [2], [1], [1], [0, 0, 0, 1, 1, 1], [0], [0]>} : vector<4x8x16xbf16>, vector<4x8x16xbf16>, vector<4x8x8xf32> -> vector<4x8x8xf32>
    "tpu.trace_stop"() : () -> ()
    %200 = arith.addf %199, %30 : vector<4x8x8xf32>
    %cst_54 = arith.constant dense<0xFF800000> : vector<4x8xf32>
    %201 = vector.multi_reduction <maximumf>, %200, %cst_54 [2] : vector<4x8x8xf32> to vector<4x8xf32>
    %202 = vector.shape_cast %201 : vector<4x8xf32> to vector<4x8x1xf32>
    %203 = vector.broadcast %202 : vector<4x8x1xf32> to vector<4x8x8xf32>
    %204 = arith.subf %200, %203 : vector<4x8x8xf32>
    %205 = math.exp %204 : vector<4x8x8xf32>
    %cst_55 = arith.constant dense<0.000000e+00> : vector<4x8xf32>
    %206 = vector.multi_reduction <add>, %205, %cst_55 [2] : vector<4x8x8xf32> to vector<4x8xf32>
    %207 = vector.shape_cast %206 : vector<4x8xf32> to vector<4x8x1xf32>
    %208 = tpu.reciprocal %207 {approx = true} : vector<4x8x1xf32> -> vector<4x8x1xf32>
    %209 = vector.broadcast %208 : vector<4x8x1xf32> to vector<4x8x8xf32>
    %210 = arith.mulf %205, %209 : vector<4x8x8xf32>
    %211 = arith.truncf %210 : vector<4x8x8xf32> to vector<4x8x8xbf16>
    "tpu.trace_start"() <{level = 10 : i32, message = "bqk,bkd->bqd"}> : () -> ()
    %cst_56 = arith.constant dense<0.000000e+00> : vector<4x8x16xf32>
    %212 = tpu.matmul %211, %198, %cst_56 {dimension_numbers = #tpu.dot_dimension_numbers<[2], [1], [1], [2], [0, 0, 0, 1, 1, 2], [0], [0]>} : vector<4x8x8xbf16>, vector<4x8x16xbf16>, vector<4x8x16xf32> -> vector<4x8x16xf32>
    "tpu.trace_stop"() : () -> ()
    %213 = vector.extract_strided_slice %170 {offsets = [0, 96], sizes = [32, 32], strides = [1, 1]} : vector<32x128xbf16> to vector<32x32xbf16>
    %214 = vector.extract_strided_slice %168 {offsets = [1, 0], sizes = [1, 32], strides = [1, 1]} : vector<8x128xf32> to vector<1x32xf32>
    %215 = vector.extract_strided_slice %212 {offsets = [0, 0, 0], sizes = [2, 8, 16], strides = [1, 1, 1]} : vector<4x8x16xf32> to vector<2x8x16xf32>
    %216 = vector.shape_cast %215 : vector<2x8x16xf32> to vector<16x16xf32>
    %217 = arith.truncf %216 : vector<16x16xf32> to vector<16x16xbf16>
    %218 = vector.extract_strided_slice %213 {offsets = [0, 0], sizes = [16, 32], strides = [1, 1]} : vector<32x32xbf16> to vector<16x32xbf16>
    %cst_57 = arith.constant dense<0.000000e+00> : vector<16x32xf32>
    %219 = tpu.matmul %217, %218, %cst_57 {dimension_numbers = #tpu.dot_dimension_numbers<[1], [0], [0], [1], [0, 0, 1, 1], [], []>} : vector<16x16xbf16>, vector<16x32xbf16>, vector<16x32xf32> -> vector<16x32xf32>
    %220 = vector.broadcast %214 : vector<1x32xf32> to vector<16x32xf32>
    %221 = arith.addf %220, %219 : vector<16x32xf32>
    %222 = vector.extract_strided_slice %212 {offsets = [2, 0, 0], sizes = [2, 8, 16], strides = [1, 1, 1]} : vector<4x8x16xf32> to vector<2x8x16xf32>
    %223 = vector.shape_cast %222 : vector<2x8x16xf32> to vector<16x16xf32>
    %224 = arith.truncf %223 : vector<16x16xf32> to vector<16x16xbf16>
    %225 = vector.extract_strided_slice %213 {offsets = [16, 0], sizes = [16, 32], strides = [1, 1]} : vector<32x32xbf16> to vector<16x32xbf16>
    %cst_58 = arith.constant dense<0.000000e+00> : vector<16x32xf32>
    %226 = tpu.matmul %224, %225, %cst_58 {dimension_numbers = #tpu.dot_dimension_numbers<[1], [0], [0], [1], [0, 0, 1, 1], [], []>} : vector<16x16xbf16>, vector<16x32xbf16>, vector<16x32xf32> -> vector<16x32xf32>
    %227 = arith.addf %221, %226 : vector<16x32xf32>
    %228 = arith.addf %166, %227 : vector<16x32xf32>
    %229 = vector.extract_strided_slice %168 {offsets = [2, 0], sizes = [1, 32], strides = [1, 1]} : vector<8x128xf32> to vector<1x32xf32>
    %230 = vector.extract_strided_slice %168 {offsets = [3, 0], sizes = [1, 32], strides = [1, 1]} : vector<8x128xf32> to vector<1x32xf32>
    %cst_59 = arith.constant dense<0.000000e+00> : vector<16xf32>
    %231 = vector.multi_reduction <add>, %228, %cst_59 [1] : vector<16x32xf32> to vector<16xf32>
    %232 = vector.shape_cast %231 : vector<16xf32> to vector<16x1xf32>
    %cst_60 = arith.constant 3.200000e+01 : f32
    %233 = vector.broadcast %cst_60 : f32 to vector<16x1xf32>
    %234 = arith.divf %232, %233 : vector<16x1xf32>
    %235 = vector.broadcast %234 : vector<16x1xf32> to vector<16x32xf32>
    %236 = arith.subf %228, %235 : vector<16x32xf32>
    %237 = arith.mulf %236, %236 : vector<16x32xf32>
    %cst_61 = arith.constant dense<0.000000e+00> : vector<16xf32>
    %238 = vector.multi_reduction <add>, %237, %cst_61 [1] : vector<16x32xf32> to vector<16xf32>
    %239 = vector.shape_cast %238 : vector<16xf32> to vector<16x1xf32>
    %cst_62 = arith.constant 3.200000e+01 : f32
    %240 = vector.broadcast %cst_62 : f32 to vector<16x1xf32>
    %241 = arith.divf %239, %240 : vector<16x1xf32>
    %242 = vector.broadcast %234 : vector<16x1xf32> to vector<16x32xf32>
    %243 = arith.subf %228, %242 : vector<16x32xf32>
    %cst_63 = arith.constant 9.99999996E-13 : f32
    %244 = vector.broadcast %cst_63 : f32 to vector<16x1xf32>
    %245 = arith.addf %241, %244 : vector<16x1xf32>
    %246 = math.rsqrt %245 : vector<16x1xf32>
    %247 = vector.broadcast %246 : vector<16x1xf32> to vector<16x32xf32>
    %248 = arith.mulf %243, %247 : vector<16x32xf32>
    %249 = vector.broadcast %229 : vector<1x32xf32> to vector<16x32xf32>
    %250 = arith.mulf %248, %249 : vector<16x32xf32>
    %251 = vector.broadcast %230 : vector<1x32xf32> to vector<16x32xf32>
    %252 = arith.addf %250, %251 : vector<16x32xf32>
    %253 = arith.truncf %252 : vector<16x32xf32> to vector<16x32xbf16>
    %254 = vector.extract_strided_slice %172 {offsets = [0, 0], sizes = [32, 64], strides = [1, 1]} : vector<96x64xbf16> to vector<32x64xbf16>
    %cst_64 = arith.constant dense<0.000000e+00> : vector<16x64xf32>
    %255 = tpu.matmul %253, %254, %cst_64 {dimension_numbers = #tpu.dot_dimension_numbers<[1], [0], [0], [1], [0, 0, 1, 1], [], []>} : vector<16x32xbf16>, vector<32x64xbf16>, vector<16x64xf32> -> vector<16x64xf32>
    %256 = vector.extract_strided_slice %168 {offsets = [4, 0], sizes = [1, 64], strides = [1, 1]} : vector<8x128xf32> to vector<1x64xf32>
    %257 = vector.broadcast %256 : vector<1x64xf32> to vector<16x64xf32>
    %258 = arith.addf %255, %257 : vector<16x64xf32>
    %259 = arith.mulf %258, %258 : vector<16x64xf32>
    %260 = arith.mulf %258, %259 : vector<16x64xf32>
    %cst_65 = arith.constant 4.471500e-02 : f32
    %261 = vector.broadcast %cst_65 : f32 to vector<16x64xf32>
    %262 = arith.mulf %261, %260 : vector<16x64xf32>
    %263 = arith.addf %258, %262 : vector<16x64xf32>
    %cst_66 = arith.constant 0.797884583 : f32
    %264 = vector.broadcast %cst_66 : f32 to vector<16x64xf32>
    %265 = arith.mulf %264, %263 : vector<16x64xf32>
    %266 = math.tanh %265 : vector<16x64xf32>
    %cst_67 = arith.constant 1.000000e+00 : f32
    %267 = vector.broadcast %cst_67 : f32 to vector<16x64xf32>
    %268 = arith.addf %267, %266 : vector<16x64xf32>
    %cst_68 = arith.constant 5.000000e-01 : f32
    %269 = vector.broadcast %cst_68 : f32 to vector<16x64xf32>
    %270 = arith.mulf %269, %268 : vector<16x64xf32>
    %271 = arith.mulf %258, %270 : vector<16x64xf32>
    %272 = arith.truncf %271 : vector<16x64xf32> to vector<16x64xbf16>
    %273 = vector.extract_strided_slice %172 {offsets = [32, 0], sizes = [64, 32], strides = [1, 1]} : vector<96x64xbf16> to vector<64x32xbf16>
    %cst_69 = arith.constant dense<0.000000e+00> : vector<16x32xf32>
    %274 = tpu.matmul %272, %273, %cst_69 {dimension_numbers = #tpu.dot_dimension_numbers<[1], [0], [0], [1], [0, 0, 1, 1], [], []>} : vector<16x64xbf16>, vector<64x32xbf16>, vector<16x32xf32> -> vector<16x32xf32>
    %275 = vector.extract_strided_slice %168 {offsets = [5, 0], sizes = [1, 32], strides = [1, 1]} : vector<8x128xf32> to vector<1x32xf32>
    %276 = vector.broadcast %275 : vector<1x32xf32> to vector<16x32xf32>
    %277 = arith.addf %274, %276 : vector<16x32xf32>
    %278 = arith.addf %252, %277 : vector<16x32xf32>
    %279 = vector.extract_strided_slice %168 {offsets = [6, 0], sizes = [1, 32], strides = [1, 1]} : vector<8x128xf32> to vector<1x32xf32>
    %280 = vector.extract_strided_slice %168 {offsets = [7, 0], sizes = [1, 32], strides = [1, 1]} : vector<8x128xf32> to vector<1x32xf32>
    %cst_70 = arith.constant dense<0.000000e+00> : vector<16xf32>
    %281 = vector.multi_reduction <add>, %278, %cst_70 [1] : vector<16x32xf32> to vector<16xf32>
    %282 = vector.shape_cast %281 : vector<16xf32> to vector<16x1xf32>
    %cst_71 = arith.constant 3.200000e+01 : f32
    %283 = vector.broadcast %cst_71 : f32 to vector<16x1xf32>
    %284 = arith.divf %282, %283 : vector<16x1xf32>
    %285 = vector.broadcast %284 : vector<16x1xf32> to vector<16x32xf32>
    %286 = arith.subf %278, %285 : vector<16x32xf32>
    %287 = arith.mulf %286, %286 : vector<16x32xf32>
    %cst_72 = arith.constant dense<0.000000e+00> : vector<16xf32>
    %288 = vector.multi_reduction <add>, %287, %cst_72 [1] : vector<16x32xf32> to vector<16xf32>
    %289 = vector.shape_cast %288 : vector<16xf32> to vector<16x1xf32>
    %cst_73 = arith.constant 3.200000e+01 : f32
    %290 = vector.broadcast %cst_73 : f32 to vector<16x1xf32>
    %291 = arith.divf %289, %290 : vector<16x1xf32>
    %292 = vector.broadcast %284 : vector<16x1xf32> to vector<16x32xf32>
    %293 = arith.subf %278, %292 : vector<16x32xf32>
    %cst_74 = arith.constant 9.99999996E-13 : f32
    %294 = vector.broadcast %cst_74 : f32 to vector<16x1xf32>
    %295 = arith.addf %291, %294 : vector<16x1xf32>
    %296 = math.rsqrt %295 : vector<16x1xf32>
    %297 = vector.broadcast %296 : vector<16x1xf32> to vector<16x32xf32>
    %298 = arith.mulf %293, %297 : vector<16x32xf32>
    %299 = vector.broadcast %279 : vector<1x32xf32> to vector<16x32xf32>
    %300 = arith.mulf %298, %299 : vector<16x32xf32>
    %301 = vector.broadcast %280 : vector<1x32xf32> to vector<16x32xf32>
    %302 = arith.addf %300, %301 : vector<16x32xf32>
    %303 = vector.shape_cast %302 : vector<16x32xf32> to vector<2x8x32xf32>
    %304 = vector.extract_strided_slice %303 {offsets = [0, 0, 0], sizes = [2, 1, 32], strides = [1, 1, 1]} : vector<2x8x32xf32> to vector<2x1x32xf32>
    %305 = vector.shape_cast %304 : vector<2x1x32xf32> to vector<2x32xf32>
    %306 = vector.extract_strided_slice %303 {offsets = [0, 1, 0], sizes = [2, 1, 32], strides = [1, 1, 1]} : vector<2x8x32xf32> to vector<2x1x32xf32>
    %307 = vector.shape_cast %306 : vector<2x1x32xf32> to vector<2x32xf32>
    %308 = vector.extract_strided_slice %303 {offsets = [0, 2, 0], sizes = [2, 1, 32], strides = [1, 1, 1]} : vector<2x8x32xf32> to vector<2x1x32xf32>
    %309 = vector.shape_cast %308 : vector<2x1x32xf32> to vector<2x32xf32>
    %310 = vector.extract_strided_slice %303 {offsets = [0, 3, 0], sizes = [2, 1, 32], strides = [1, 1, 1]} : vector<2x8x32xf32> to vector<2x1x32xf32>
    %311 = vector.shape_cast %310 : vector<2x1x32xf32> to vector<2x32xf32>
    %312 = vector.extract_strided_slice %303 {offsets = [0, 4, 0], sizes = [2, 1, 32], strides = [1, 1, 1]} : vector<2x8x32xf32> to vector<2x1x32xf32>
    %313 = vector.shape_cast %312 : vector<2x1x32xf32> to vector<2x32xf32>
    %314 = vector.extract_strided_slice %303 {offsets = [0, 5, 0], sizes = [2, 1, 32], strides = [1, 1, 1]} : vector<2x8x32xf32> to vector<2x1x32xf32>
    %315 = vector.shape_cast %314 : vector<2x1x32xf32> to vector<2x32xf32>
    %316 = vector.extract_strided_slice %303 {offsets = [0, 6, 0], sizes = [2, 1, 32], strides = [1, 1, 1]} : vector<2x8x32xf32> to vector<2x1x32xf32>
    %317 = vector.shape_cast %316 : vector<2x1x32xf32> to vector<2x32xf32>
    %318 = vector.extract_strided_slice %303 {offsets = [0, 7, 0], sizes = [2, 1, 32], strides = [1, 1, 1]} : vector<2x8x32xf32> to vector<2x1x32xf32>
    %319 = vector.shape_cast %318 : vector<2x1x32xf32> to vector<2x32xf32>
    %320 = tpu.concatenate %305, %307, %309, %311, %313, %315, %317, %319 in 1 : vector<2x32xf32>, vector<2x32xf32>, vector<2x32xf32>, vector<2x32xf32>, vector<2x32xf32>, vector<2x32xf32>, vector<2x32xf32>, vector<2x32xf32> -> vector<2x256xf32>
    %321 = arith.truncf %320 : vector<2x256xf32> to vector<2x256xbf16>
    %c0_75 = arith.constant 0 : index
    %c0_76 = arith.constant 0 : index
    %322 = vector.load %arg5[%c0_75, %c0_76] : memref<288x32xbf16, #tpu.memory_space<vmem>>, vector<256x32xbf16>
    %cst_77 = arith.constant dense<0.000000e+00> : vector<2x32xf32>
    %323 = tpu.matmul %321, %322, %cst_77 {dimension_numbers = #tpu.dot_dimension_numbers<[1], [0], [0], [1], [0, 0, 1, 1], [], []>} : vector<2x256xbf16>, vector<256x32xbf16>, vector<2x32xf32> -> vector<2x32xf32>
    %324 = vector.extract_strided_slice %1 {offsets = [2, 0], sizes = [1, 32], strides = [1, 1]} : vector<8x128xf32> to vector<1x32xf32>
    %325 = vector.broadcast %324 : vector<1x32xf32> to vector<2x32xf32>
    %326 = arith.addf %323, %325 : vector<2x32xf32>
    %327 = arith.truncf %326 : vector<2x32xf32> to vector<2x32xbf16>
    %c256 = arith.constant 256 : index
    %c0_78 = arith.constant 0 : index
    %328 = vector.load %arg5[%c256, %c0_78] : memref<288x32xbf16, #tpu.memory_space<vmem>>, vector<32x3xbf16>
    %cst_79 = arith.constant dense<0.000000e+00> : vector<2x3xf32>
    %329 = tpu.matmul %327, %328, %cst_79 {dimension_numbers = #tpu.dot_dimension_numbers<[1], [0], [0], [1], [0, 0, 1, 1], [], []>} : vector<2x32xbf16>, vector<32x3xbf16>, vector<2x3xf32> -> vector<2x3xf32>
    %330 = vector.extract_strided_slice %1 {offsets = [3, 0], sizes = [1, 3], strides = [1, 1]} : vector<8x128xf32> to vector<1x3xf32>
    %331 = vector.broadcast %330 : vector<1x3xf32> to vector<2x3xf32>
    %332 = arith.addf %329, %331 : vector<2x3xf32>
    %cst_80 = arith.constant dense<0xFF800000> : vector<2xf32>
    %333 = vector.multi_reduction <maximumf>, %332, %cst_80 [1] : vector<2x3xf32> to vector<2xf32>
    %334 = vector.shape_cast %333 : vector<2xf32> to vector<2x1xf32>
    %335 = vector.broadcast %334 : vector<2x1xf32> to vector<2x3xf32>
    %336 = arith.subf %332, %335 : vector<2x3xf32>
    %337 = math.exp %336 : vector<2x3xf32>
    %cst_81 = arith.constant dense<0.000000e+00> : vector<2xf32>
    %338 = vector.multi_reduction <add>, %337, %cst_81 [1] : vector<2x3xf32> to vector<2xf32>
    %339 = vector.shape_cast %338 : vector<2xf32> to vector<2x1xf32>
    %340 = vector.broadcast %339 : vector<2x1xf32> to vector<2x3xf32>
    %341 = arith.divf %337, %340 : vector<2x3xf32>
    %c0_82 = arith.constant 0 : index
    %c0_83 = arith.constant 0 : index
    %342 = vector.load %arg6[%c0_82, %c0_83] : memref<2x3xf32, #tpu.memory_space<vmem>>, vector<2x3xf32>
    tpu.vector_store %arg6[%c0_82, %c0_83], %341 {strides = array<i32>} : memref<2x3xf32, #tpu.memory_space<vmem>>, vector<2x3xf32>,
    return
  }
}

</mosaic_0001>

<llo_original>
// kernel: tpu_custom_call.1
$region0: #{tpu_custom_call.1}
  #allocation0 [shape = 'u32[]', space=smem, size = 0x4, offset = 0x4, fixed_abs, tag = 'smem constant byte address 0x4 - core index']
  #allocation1 [shape = 'u32[144,128]{1,0:T(1,128)}', space=vmem, size = 0x12000, scoped, tag = 'internal scratch']
  %s0 = inlined_call_operand.vmem [shape: f32[16,32], index: 0, kind: input, shape index: {}]
  %s1 = inlined_call_operand.vmem [shape: f32[2,1,8], index: 1, kind: input, shape index: {}]
  %s2 = inlined_call_operand.vmem [shape: f32[3,8,128], index: 2, kind: input, shape index: {}]
  %s3 = inlined_call_operand.vmem [shape: bf16[2,32,128], index: 3, kind: input, shape index: {}]
  %s4 = inlined_call_operand.vmem [shape: bf16[2,96,64], index: 4, kind: input, shape index: {}]
  %s5 = inlined_call_operand.vmem [shape: bf16[288,32], index: 5, kind: input, shape index: {}]
  %s6 = inlined_call_operand.hbm [shape: f32[2,3], index: 6, kind: output, shape index: {}]
  %s7 = sld [smem:[#allocation0]]
  $region34: #{tpu_custom_call.1} parent=0
    _
  %s9 = ssub.s32 1, %s7
  %s10 = scalar_select 0, %s9, %s7
  $region1: #{tpu_custom_call.1} parent=0
    #allocation2 [shape = 'u8[1024]{0}', space=vmem, size = 0x400, scoped, tag = 'output window, operand 0, single buffered']
    #allocation3 [shape = 's32[1]{0}', space=sflag, size = 0x4, scoped, tag = 'scoped memory for tpu_custom_call.1']
    %11 = vsyncpa [#allocation3], 0
    // Predicated region
    $region2: #{tpu_custom_call.1} parent=1 // pred_check
      _
    $region3: #{tpu_custom_call.1} parent=1 // pred_check_branch
      %13 = sbr.rel (0) target = $region5
    $region4: #{tpu_custom_call.1} parent=1 // pred_region
      _
    $region5: #{tpu_custom_call.1} parent=1 // pred_fallthru
      _
    // Predicated region
    $region6: #{tpu_custom_call.1} parent=1 // pred_check
      _
    $region7: #{tpu_custom_call.1} parent=1 // pred_check_branch
      %15 = sbr.rel (0) target = $region9
    $region8: #{tpu_custom_call.1} parent=1 // pred_region
      _
    $region9: #{tpu_custom_call.1} parent=1 // pred_fallthru
      _
    // Predicated region
    $region10: #{tpu_custom_call.1} parent=1 // pred_check
      _
    $region11: #{tpu_custom_call.1} parent=1 // pred_check_branch
      %17 = sbr.rel (0) target = $region13
    $region12: #{tpu_custom_call.1} parent=1 // pred_region
      _
    $region13: #{tpu_custom_call.1} parent=1 // pred_fallthru
      _
    // Predicated region
    $region14: #{tpu_custom_call.1} parent=1 // pred_check
      _
    $region15: #{tpu_custom_call.1} parent=1 // pred_check_branch
      %19 = sbr.rel (0) target = $region17
    $region16: #{tpu_custom_call.1} parent=1 // pred_region
      _
    $region17: #{tpu_custom_call.1} parent=1 // pred_fallthru
      _
    // Predicated region
    $region18: #{tpu_custom_call.1} parent=1 // pred_check
      _
    $region19: #{tpu_custom_call.1} parent=1 // pred_check_branch
      %21 = sbr.rel (0) target = $region21
    $region20: #{tpu_custom_call.1} parent=1 // pred_region
      _
    $region21: #{tpu_custom_call.1} parent=1 // pred_fallthru
      _
    // Predicated region
    $region22: #{tpu_custom_call.1} parent=1 // pred_check
      _
    $region23: #{tpu_custom_call.1} parent=1 // pred_check_branch
      %23 = sbr.rel (0) target = $region25
    $region24: #{tpu_custom_call.1} parent=1 // pred_region
      _
    $region25: #{tpu_custom_call.1} parent=1 // pred_fallthru
      _
    %s25 = scalar_lea.vmem %s2, 16
    %v26 = vld [vmem:[%s25] sm:$0xff]
    %v27 = vld [vmem:[%s0] sm:$0xff]
    %v28 = vld [vmem:[%s0 + $0x8] sm:$0xff]
    %vm29 = vcmask 261120
    %v30 = vsel %vm29, %v27, 0.0
    %31 = vadd.xlane.f32.xlu0 %v30
    %v32 = vpop.xlane.xlu0 %31
    %v33 = vsel %vm29, %v28, 0.0
    %34 = vadd.xlane.f32.xlu0 %v33
    %v35 = vpop.xlane.xlu0 %34
    %v36 = vrcp.pop 32.0
    %v37 = vmul.f32 %v32, %v36
    %v38 = vmul.f32 %v35, %v36
    %v39 = vsub.f32 %v27, %v37
    %v40 = vsub.f32 %v28, %v38
    %v41 = vmul.f32 %v39, %v39
    %v42 = vmul.f32 %v40, %v40
    %v43 = vsel %vm29, %v41, 0.0
    %44 = vadd.xlane.f32.xlu0 %v43
    %v45 = vpop.xlane.xlu0 %44
    %v46 = vsel %vm29, %v42, 0.0
    %47 = vadd.xlane.f32.xlu0 %v46
    %v48 = vpop.xlane.xlu0 %47
    %v49 = vmul.f32 %v45, %v36
    %v50 = vmul.f32 %v48, %v36
    %v51 = vadd.f32 %v49, 1e-12
    %v52 = vadd.f32 %v50, 1e-12
    %v53 = vrsqrt.pop %v51
    %v54 = vrsqrt.pop %v52
    %v55 = vmul.f32 %v39, %v53
    %v56 = vmul.f32 %v40, %v54
    %v57 = vlaneseq
    %v58 = vshrl.u32 %v57, 7
    %v59 = vsub.s32 0, %v58
    %v60 = vrot.slane %v26, %v59
    %v61 = vmul.f32 %v55, %v60
    %v62 = vmul.f32 %v56, %v60
    %v63 = vlaneseq
    %v64 = vshrl.u32 %v63, 7
    %v65 = vsub.s32 1, %v64
    %v66 = vrot.slane %v26, %v65
    %v67 = vadd.f32 %v61, %v66
    %v68 = vadd.f32 %v62, %v66
    %v69 = vld [vmem:[%s1] sm:$0x1]
    %v70 = vld [vmem:[%s1 + $0x1] sm:$0x1]
    %v73 = vlaneseq
    %v74 = vshrl.u32 %v73, 7
    %v75 = vsub.s32 0, %v74
    %v76 = vrot.slane %v69, %v75
    %v77 = vlaneseq
    %v78 = vshrl.u32 %v77, 7
    %v79 = vsub.s32 0, %v78
    %v80 = vrot.slane %v70, %v79
    %v83 = vld [vmem:[%s2] sm:$0xff]
    %v84 = vld [vmem:[%s3] sm:$0xf]
    %v85 = vld [vmem:[%s3 + $0x4] sm:$0xf]
    %v86 = vld [vmem:[%s3 + $0x8] sm:$0xf]
    %v87 = vld [vmem:[%s3 + $0xc] sm:$0xf]
    %v88 = vld [vmem:[%s4] sm:$0xf]
    %v89 = vld [vmem:[%s4 + $0x4] sm:$0xf]
    %v90 = vld [vmem:[%s4 + $0x8] sm:$0xf]
    %v91 = vld [vmem:[%s4 + $0xc] sm:$0xf]
    %v92 = vld [vmem:[%s4 + $0x10] sm:$0xf]
    %v93 = vld [vmem:[%s4 + $0x14] sm:$0xf]
    %v94 = vld [vmem:[%s4 + $0x18] sm:$0xf]
    %v95 = vld [vmem:[%s4 + $0x1c] sm:$0xf]
    %v96 = vld [vmem:[%s4 + $0x20] sm:$0xf]
    %v97 = vld [vmem:[%s4 + $0x24] sm:$0xf]
    %v98 = vld [vmem:[%s4 + $0x28] sm:$0xf]
    %v99 = vld [vmem:[%s4 + $0x2c] sm:$0xf]
    %v100 = vpack.c.bf16 %v68, %v67
    %v101 = vlaneseq
    %v102 = vshrl.u32 %v101, 7
    %v103 = vsub.s32 0, %v102
    %v104 = vrot.slane %v83, %v103
    %v109 = vunpack.c.l.b16 %v84
    %v110 = vunpack.c.l.b16 %v85
    %v111 = vunpack.c.l.b16 %v86
    %v112 = vunpack.c.l.b16 %v87
    %v113 = vpack.c.b16 %v110, %v109
    %v114 = vpack.c.b16 %v112, %v111
    %v118 = vsel %vm29, %v100, 0
    %120 = vmatprep.subr.bf16.mxu0 0
    %121 = vmatpush1.bf16.msra.mxu0 0
    %122 = vmatprep.subr.bf16.mxu0 0
    %123 = vmatpush1.bf16.msra.mxu0 0
    %124 = vmatprep.subr.bf16.mxu0 0
    %125 = vmatpush1.bf16.msra.mxu0 0
    %126 = vmatprep.subr.bf16.mxu0 0
    %127 = vmatpush1.bf16.msra.mxu0 0
    %128 = vmatprep.subr.bf16.mxu0 0
    %129 = vmatpush1.bf16.msra.mxu0 0
    %130 = vmatprep.subr.bf16.mxu0 0
    %131 = vmatpush1.bf16.msra.mxu0 0
    %132 = vmatprep.subr.bf16.mxu0 0
    %133 = vmatpush1.bf16.msra.mxu0 %v114
    %134 = vmatprep.subr.bf16.mxu0 0
    %135 = vmatpush1.bf16.msra.mxu0 %v113
    %136 = vmatprep.subr.bf16.mxu0 0
    %137 = vmatpush2.bf16.msra.mxu0 0
    %138 = vmatprep.subr.bf16.mxu0 0
    %139 = vmatpush2.bf16.msra.mxu0 0
    %140 = vmatprep.subr.bf16.mxu0 0
    %141 = vmatpush2.bf16.msra.mxu0 0
    %142 = vmatprep.subr.bf16.mxu0 0
    %143 = vmatpush2.bf16.msra.mxu0 0
    %144 = vmatprep.subr.bf16.mxu0 0
    %145 = vmatpush2.bf16.msra.mxu0 0
    %146 = vmatprep.subr.bf16.mxu0 0
    %147 = vmatpush2.bf16.msra.mxu0 0
    %148 = vmatprep.subr.bf16.mxu0 0
    %149 = vmatpush2.bf16.msra.mxu0 0
    %150 = vmatprep.subr.bf16.mxu0 0
    %151 = vmatpush2.bf16.msra.mxu0 0
    %152 = vmatprep.mubr.bf16.mxu0 0
    %153 = vmatmul.mubr.bf16.gmra.mxu0 %v118
    %v154 = vpop.f32.mrf.mxu0
    %v155 = vadd.f32 %v104, %v154
    %v156 = vpop.f32.mrf.mxu0
    %v157 = vpop.f32.mrf.mxu0
    %v158 = vadd.f32 %v104, %v157
    %v159 = vpop.f32.mrf.mxu0
    %160 = vdwg.mxu0
    %v161 = vmul.f32 %v155, 0.25
    %v162 = vmul.f32 %v158, 0.25
    %165 = vrot.lane.b32.xlu0 %v161, 112
    %v166 = vpop.permute.xlu0 %165
    %167 = vrot.lane.b32.xlu0 %v162, 112
    %v168 = vpop.permute.xlu0 %167
    %v171 = vpack.c.bf16 %v161, %v161
    %v172 = vpack.c.bf16 %v162, %v162
    %v173 = vpack.c.bf16 %v166, %v166
    %v174 = vpack.c.bf16 %v168, %v168
    %177 = vrot.lane.b32.xlu0 %v155, 112
    %v178 = vpop.permute.xlu0 %177
    %179 = vrot.lane.b32.xlu0 %v158, 112
    %v180 = vpop.permute.xlu0 %179
    %v183 = vpack.c.bf16 %v155, %v155
    %v184 = vpack.c.bf16 %v158, %v158
    %v185 = vpack.c.bf16 %v178, %v178
    %v186 = vpack.c.bf16 %v180, %v180
    %188 = vrot.lane.b32.xlu0 %v183, 96
    %v189 = vpop.permute.xlu0 %188
    %vm190 = vcmask 130048
    %v192 = vsel %vm190, %v171, 0
    %v195 = vsel %vm190, %v189, 0
    %197 = vmatprep.subr.bf16.mxu0 0
    %198 = vmatpush1.bf16.xpose.msra.mxu0 0
    %199 = vmatprep.subr.bf16.mxu0 0
    %200 = vmatpush1.bf16.xpose.msra.mxu0 0
    %201 = vmatprep.subr.bf16.mxu0 0
    %202 = vmatpush1.bf16.xpose.msra.mxu0 0
    %203 = vmatprep.subr.bf16.mxu0 0
    %204 = vmatpush1.bf16.xpose.msra.mxu0 0
    %205 = vmatprep.subr.bf16.mxu0 0
    %206 = vmatpush1.bf16.xpose.msra.mxu0 0
    %207 = vmatprep.subr.bf16.mxu0 0
    %208 = vmatpush1.bf16.xpose.msra.mxu0 0
    %209 = vmatprep.subr.bf16.mxu0 0
    %210 = vmatpush1.bf16.xpose.msra.mxu0 0
    %211 = vmatprep.subr.bf16.mxu0 0
    %212 = vmatpush1.bf16.xpose.msra.mxu0 %v195
    %213 = vmatprep.subr.bf16.mxu0 0
    %214 = vmatpush2.bf16.xpose.msra.mxu0 0
    %215 = vmatprep.subr.bf16.mxu0 0
    %216 = vmatpush2.bf16.xpose.msra.mxu0 0
    %217 = vmatprep.subr.bf16.mxu0 0
    %218 = vmatpush2.bf16.xpose.msra.mxu0 0
    %219 = vmatprep.subr.bf16.mxu0 0
    %220 = vmatpush2.bf16.xpose.msra.mxu0 0
    %221 = vmatprep.subr.bf16.mxu0 0
    %222 = vmatpush2.bf16.xpose.msra.mxu0 0
    %223 = vmatprep.subr.bf16.mxu0 0
    %224 = vmatpush2.bf16.xpose.msra.mxu0 0
    %225 = vmatprep.subr.bf16.mxu0 0
    %226 = vmatpush2.bf16.xpose.msra.mxu0 0
    %227 = vmatprep.subr.bf16.mxu0 0
    %228 = vmatpush2.bf16.xpose.msra.mxu0 0
    %229 = vmatprep.mubr.bf16.mxu0 0
    %230 = vmatmul.mubr.bf16.gmra.mxu0 %v192
    %v231 = vpop.f32.mrf.mxu0
    %v232 = vadd.f32 %v76, %v231
    %v233 = vpop.f32.mrf.mxu0
    %v234 = vpop.f32.mrf.mxu0
    %v235 = vpop.f32.mrf.mxu0
    %236 = vdwg.mxu0
    %238 = vrot.lane.b32.xlu0 %v184, 96
    %v239 = vpop.permute.xlu0 %238
    %v241 = vsel %vm190, %v172, 0
    %v244 = vsel %vm190, %v239, 0
    %246 = vmatprep.subr.bf16.mxu0 0
    %247 = vmatpush1.bf16.xpose.msra.mxu0 0
    %248 = vmatprep.subr.bf16.mxu0 0
    %249 = vmatpush1.bf16.xpose.msra.mxu0 0
    %250 = vmatprep.subr.bf16.mxu0 0
    %251 = vmatpush1.bf16.xpose.msra.mxu0 0
    %252 = vmatprep.subr.bf16.mxu0 0
    %253 = vmatpush1.bf16.xpose.msra.mxu0 0
    %254 = vmatprep.subr.bf16.mxu0 0
    %255 = vmatpush1.bf16.xpose.msra.mxu0 0
    %256 = vmatprep.subr.bf16.mxu0 0
    %257 = vmatpush1.bf16.xpose.msra.mxu0 0
    %258 = vmatprep.subr.bf16.mxu0 0
    %259 = vmatpush1.bf16.xpose.msra.mxu0 0
    %260 = vmatprep.subr.bf16.mxu0 0
    %261 = vmatpush1.bf16.xpose.msra.mxu0 %v244
    %262 = vmatprep.subr.bf16.mxu0 0
    %263 = vmatpush2.bf16.xpose.msra.mxu0 0
    %264 = vmatprep.subr.bf16.mxu0 0
    %265 = vmatpush2.bf16.xpose.msra.mxu0 0
    %266 = vmatprep.subr.bf16.mxu0 0
    %267 = vmatpush2.bf16.xpose.msra.mxu0 0
    %268 = vmatprep.subr.bf16.mxu0 0
    %269 = vmatpush2.bf16.xpose.msra.mxu0 0
    %270 = vmatprep.subr.bf16.mxu0 0
    %271 = vmatpush2.bf16.xpose.msra.mxu0 0
    %272 = vmatprep.subr.bf16.mxu0 0
    %273 = vmatpush2.bf16.xpose.msra.mxu0 0
    %274 = vmatprep.subr.bf16.mxu0 0
    %275 = vmatpush2.bf16.xpose.msra.mxu0 0
    %276 = vmatprep.subr.bf16.mxu0 0
    %277 = vmatpush2.bf16.xpose.msra.mxu0 0
    %278 = vmatprep.mubr.bf16.mxu0 0
    %279 = vmatmul.mubr.bf16.gmra.mxu0 %v241
    %v280 = vpop.f32.mrf.mxu0
    %v281 = vadd.f32 %v80, %v280
    %v282 = vpop.f32.mrf.mxu0
    %v283 = vpop.f32.mrf.mxu0
    %v284 = vpop.f32.mrf.mxu0
    %285 = vdwg.mxu0
    %287 = vrot.lane.b32.xlu0 %v185, 96
    %v288 = vpop.permute.xlu0 %287
    %v290 = vsel %vm190, %v173, 0
    %v293 = vsel %vm190, %v288, 0
    %295 = vmatprep.subr.bf16.mxu0 0
    %296 = vmatpush1.bf16.xpose.msra.mxu0 0
    %297 = vmatprep.subr.bf16.mxu0 0
    %298 = vmatpush1.bf16.xpose.msra.mxu0 0
    %299 = vmatprep.subr.bf16.mxu0 0
    %300 = vmatpush1.bf16.xpose.msra.mxu0 0
    %301 = vmatprep.subr.bf16.mxu0 0
    %302 = vmatpush1.bf16.xpose.msra.mxu0 0
    %303 = vmatprep.subr.bf16.mxu0 0
    %304 = vmatpush1.bf16.xpose.msra.mxu0 0
    %305 = vmatprep.subr.bf16.mxu0 0
    %306 = vmatpush1.bf16.xpose.msra.mxu0 0
    %307 = vmatprep.subr.bf16.mxu0 0
    %308 = vmatpush1.bf16.xpose.msra.mxu0 0
    %309 = vmatprep.subr.bf16.mxu0 0
    %310 = vmatpush1.bf16.xpose.msra.mxu0 %v293
    %311 = vmatprep.subr.bf16.mxu0 0
    %312 = vmatpush2.bf16.xpose.msra.mxu0 0
    %313 = vmatprep.subr.bf16.mxu0 0
    %314 = vmatpush2.bf16.xpose.msra.mxu0 0
    %315 = vmatprep.subr.bf16.mxu0 0
    %316 = vmatpush2.bf16.xpose.msra.mxu0 0
    %317 = vmatprep.subr.bf16.mxu0 0
    %318 = vmatpush2.bf16.xpose.msra.mxu0 0
    %319 = vmatprep.subr.bf16.mxu0 0
    %320 = vmatpush2.bf16.xpose.msra.mxu0 0
    %321 = vmatprep.subr.bf16.mxu0 0
    %322 = vmatpush2.bf16.xpose.msra.mxu0 0
    %323 = vmatprep.subr.bf16.mxu0 0
    %324 = vmatpush2.bf16.xpose.msra.mxu0 0
    %325 = vmatprep.subr.bf16.mxu0 0
    %326 = vmatpush2.bf16.xpose.msra.mxu0 0
    %327 = vmatprep.mubr.bf16.mxu0 0
    %328 = vmatmul.mubr.bf16.gmra.mxu0 %v290
    %v329 = vpop.f32.mrf.mxu0
    %v330 = vadd.f32 %v76, %v329
    %v331 = vpop.f32.mrf.mxu0
    %v332 = vpop.f32.mrf.mxu0
    %v333 = vpop.f32.mrf.mxu0
    %334 = vdwg.mxu0
    %336 = vrot.lane.b32.xlu0 %v186, 96
    %v337 = vpop.permute.xlu0 %336
    %v339 = vsel %vm190, %v174, 0
    %v342 = vsel %vm190, %v337, 0
    %344 = vmatprep.subr.bf16.mxu0 0
    %345 = vmatpush1.bf16.xpose.msra.mxu0 0
    %346 = vmatprep.subr.bf16.mxu0 0
    %347 = vmatpush1.bf16.xpose.msra.mxu0 0
    %348 = vmatprep.subr.bf16.mxu0 0
    %349 = vmatpush1.bf16.xpose.msra.mxu0 0
    %350 = vmatprep.subr.bf16.mxu0 0
    %351 = vmatpush1.bf16.xpose.msra.mxu0 0
    %352 = vmatprep.subr.bf16.mxu0 0
    %353 = vmatpush1.bf16.xpose.msra.mxu0 0
    %354 = vmatprep.subr.bf16.mxu0 0
    %355 = vmatpush1.bf16.xpose.msra.mxu0 0
    %356 = vmatprep.subr.bf16.mxu0 0
    %357 = vmatpush1.bf16.xpose.msra.mxu0 0
    %358 = vmatprep.subr.bf16.mxu0 0
    %359 = vmatpush1.bf16.xpose.msra.mxu0 %v342
    %360 = vmatprep.subr.bf16.mxu0 0
    %361 = vmatpush2.bf16.xpose.msra.mxu0 0
    %362 = vmatprep.subr.bf16.mxu0 0
    %363 = vmatpush2.bf16.xpose.msra.mxu0 0
    %364 = vmatprep.subr.bf16.mxu0 0
    %365 = vmatpush2.bf16.xpose.msra.mxu0 0
    %366 = vmatprep.subr.bf16.mxu0 0
    %367 = vmatpush2.bf16.xpose.msra.mxu0 0
    %368 = vmatprep.subr.bf16.mxu0 0
    %369 = vmatpush2.bf16.xpose.msra.mxu0 0
    %370 = vmatprep.subr.bf16.mxu0 0
    %371 = vmatpush2.bf16.xpose.msra.mxu0 0
    %372 = vmatprep.subr.bf16.mxu0 0
    %373 = vmatpush2.bf16.xpose.msra.mxu0 0
    %374 = vmatprep.subr.bf16.mxu0 0
    %375 = vmatpush2.bf16.xpose.msra.mxu0 0
    %376 = vmatprep.mubr.bf16.mxu0 0
    %377 = vmatmul.mubr.bf16.gmra.mxu0 %v339
    %v378 = vpop.f32.mrf.mxu0
    %v379 = vadd.f32 %v80, %v378
    %v380 = vpop.f32.mrf.mxu0
    %v381 = vpop.f32.mrf.mxu0
    %v382 = vpop.f32.mrf.mxu0
    %383 = vdwg.mxu0
    %vm384 = vcmask 64512
    %v385 = vsel %vm384, %v232, -inf
    %386 = vmax.xlane.f32.xlu0 %v385
    %v387 = vpop.xlane.xlu0 %386
    %v388 = vsel %vm384, %v281, -inf
    %389 = vmax.xlane.f32.xlu0 %v388
    %v390 = vpop.xlane.xlu0 %389
    %v391 = vsel %vm384, %v330, -inf
    %392 = vmax.xlane.f32.xlu0 %v391
    %v393 = vpop.xlane.xlu0 %392
    %v394 = vsel %vm384, %v379, -inf
    %395 = vmax.xlane.f32.xlu0 %v394
    %v396 = vpop.xlane.xlu0 %395
    %v397 = vsub.f32 %v232, %v387
    %v398 = vsub.f32 %v281, %v390
    %v399 = vsub.f32 %v330, %v393
    %v400 = vsub.f32 %v379, %v396
    %v401 = vmul.f32 %v397, 1.442695
    %v402 = vpow.pop %v401
    %v403 = vmul.f32 %v398, 1.442695
    %v404 = vpow.pop %v403
    %v405 = vmul.f32 %v399, 1.442695
    %v406 = vpow.pop %v405
    %v407 = vmul.f32 %v400, 1.442695
    %v408 = vpow.pop %v407
    %v409 = vsel %vm384, %v402, 0.0
    %410 = vadd.xlane.f32.xlu0 %v409
    %v411 = vpop.xlane.xlu0 %410
    %v412 = vsel %vm384, %v404, 0.0
    %413 = vadd.xlane.f32.xlu0 %v412
    %v414 = vpop.xlane.xlu0 %413
    %v415 = vsel %vm384, %v406, 0.0
    %416 = vadd.xlane.f32.xlu0 %v415
    %v417 = vpop.xlane.xlu0 %416
    %v418 = vsel %vm384, %v408, 0.0
    %419 = vadd.xlane.f32.xlu0 %v418
    %v420 = vpop.xlane.xlu0 %419
    %v421 = vrcp.pop %v411
    %v422 = vrcp.pop %v414
    %v423 = vrcp.pop %v417
    %v424 = vrcp.pop %v420
    %v425 = vmul.f32 %v402, %v421
    %v426 = vmul.f32 %v404, %v422
    %v427 = vmul.f32 %v406, %v423
    %v428 = vmul.f32 %v408, %v424
    %v429 = vpack.c.bf16 %v425, %v425
    %v430 = vpack.c.bf16 %v426, %v426
    %v431 = vpack.c.bf16 %v427, %v427
    %v432 = vpack.c.bf16 %v428, %v428
    %433 = vrot.lane.b32.xlu0 %v183, 64
    %v434 = vpop.permute.xlu0 %433
    %v436 = vsel %vm384, %v429, 0
    %vm438 = vcmask 1043456
    %v440 = vsel %vm438, %v434, 0
    %442 = vmatprep.subr.bf16.mxu0 0
    %443 = vmatpush1.bf16.msra.mxu0 0
    %444 = vmatprep.subr.bf16.mxu0 0
    %445 = vmatpush1.bf16.msra.mxu0 0
    %446 = vmatprep.subr.bf16.mxu0 0
    %447 = vmatpush1.bf16.msra.mxu0 0
    %448 = vmatprep.subr.bf16.mxu0 0
    %449 = vmatpush1.bf16.msra.mxu0 0
    %450 = vmatprep.subr.bf16.mxu0 0
    %451 = vmatpush1.bf16.msra.mxu0 0
    %452 = vmatprep.subr.bf16.mxu0 0
    %453 = vmatpush1.bf16.msra.mxu0 0
    %454 = vmatprep.subr.bf16.mxu0 0
    %455 = vmatpush1.bf16.msra.mxu0 0
    %456 = vmatprep.subr.bf16.mxu0 0
    %457 = vmatpush1.bf16.msra.mxu0 %v440
    %458 = vmatprep.subr.bf16.mxu0 0
    %459 = vmatpush2.bf16.msra.mxu0 0
    %460 = vmatprep.subr.bf16.mxu0 0
    %461 = vmatpush2.bf16.msra.mxu0 0
    %462 = vmatprep.subr.bf16.mxu0 0
    %463 = vmatpush2.bf16.msra.mxu0 0
    %464 = vmatprep.subr.bf16.mxu0 0
    %465 = vmatpush2.bf16.msra.mxu0 0
    %466 = vmatprep.subr.bf16.mxu0 0
    %467 = vmatpush2.bf16.msra.mxu0 0
    %468 = vmatprep.subr.bf16.mxu0 0
    %469 = vmatpush2.bf16.msra.mxu0 0
    %470 = vmatprep.subr.bf16.mxu0 0
    %471 = vmatpush2.bf16.msra.mxu0 0
    %472 = vmatprep.subr.bf16.mxu0 0
    %473 = vmatpush2.bf16.msra.mxu0 0
    %474 = vmatprep.mubr.bf16.mxu0 0
    %475 = vmatmul.mubr.bf16.gmra.mxu0 %v436
    %v476 = vpop.f32.mrf.mxu0
    %v477 = vadd.f32 0.0, %v476
    %v478 = vpop.f32.mrf.mxu0
    %v479 = vpop.f32.mrf.mxu0
    %v480 = vpop.f32.mrf.mxu0
    %481 = vdwg.mxu0
    %482 = vrot.lane.b32.xlu0 %v184, 64
    %v483 = vpop.permute.xlu0 %482
    %v485 = vsel %vm384, %v430, 0
    %v488 = vsel %vm438, %v483, 0
    %490 = vmatprep.subr.bf16.mxu0 0
    %491 = vmatpush1.bf16.msra.mxu0 0
    %492 = vmatprep.subr.bf16.mxu0 0
    %493 = vmatpush1.bf16.msra.mxu0 0
    %494 = vmatprep.subr.bf16.mxu0 0
    %495 = vmatpush1.bf16.msra.mxu0 0
    %496 = vmatprep.subr.bf16.mxu0 0
    %497 = vmatpush1.bf16.msra.mxu0 0
    %498 = vmatprep.subr.bf16.mxu0 0
    %499 = vmatpush1.bf16.msra.mxu0 0
    %500 = vmatprep.subr.bf16.mxu0 0
    %501 = vmatpush1.bf16.msra.mxu0 0
    %502 = vmatprep.subr.bf16.mxu0 0
    %503 = vmatpush1.bf16.msra.mxu0 0
    %504 = vmatprep.subr.bf16.mxu0 0
    %505 = vmatpush1.bf16.msra.mxu0 %v488
    %506 = vmatprep.subr.bf16.mxu0 0
    %507 = vmatpush2.bf16.msra.mxu0 0
    %508 = vmatprep.subr.bf16.mxu0 0
    %509 = vmatpush2.bf16.msra.mxu0 0
    %510 = vmatprep.subr.bf16.mxu0 0
    %511 = vmatpush2.bf16.msra.mxu0 0
    %512 = vmatprep.subr.bf16.mxu0 0
    %513 = vmatpush2.bf16.msra.mxu0 0
    %514 = vmatprep.subr.bf16.mxu0 0
    %515 = vmatpush2.bf16.msra.mxu0 0
    %516 = vmatprep.subr.bf16.mxu0 0
    %517 = vmatpush2.bf16.msra.mxu0 0
    %518 = vmatprep.subr.bf16.mxu0 0
    %519 = vmatpush2.bf16.msra.mxu0 0
    %520 = vmatprep.subr.bf16.mxu0 0
    %521 = vmatpush2.bf16.msra.mxu0 0
    %522 = vmatprep.mubr.bf16.mxu0 0
    %523 = vmatmul.mubr.bf16.gmra.mxu0 %v485
    %v524 = vpop.f32.mrf.mxu0
    %v525 = vadd.f32 0.0, %v524
    %v526 = vpop.f32.mrf.mxu0
    %v527 = vpop.f32.mrf.mxu0
    %v528 = vpop.f32.mrf.mxu0
    %529 = vdwg.mxu0
    %530 = vrot.lane.b32.xlu0 %v185, 64
    %v531 = vpop.permute.xlu0 %530
    %v533 = vsel %vm384, %v431, 0
    %v536 = vsel %vm438, %v531, 0
    %538 = vmatprep.subr.bf16.mxu0 0
    %539 = vmatpush1.bf16.msra.mxu0 0
    %540 = vmatprep.subr.bf16.mxu0 0
    %541 = vmatpush1.bf16.msra.mxu0 0
    %542 = vmatprep.subr.bf16.mxu0 0
    %543 = vmatpush1.bf16.msra.mxu0 0
    %544 = vmatprep.subr.bf16.mxu0 0
    %545 = vmatpush1.bf16.msra.mxu0 0
    %546 = vmatprep.subr.bf16.mxu0 0
    %547 = vmatpush1.bf16.msra.mxu0 0
    %548 = vmatprep.subr.bf16.mxu0 0
    %549 = vmatpush1.bf16.msra.mxu0 0
    %550 = vmatprep.subr.bf16.mxu0 0
    %551 = vmatpush1.bf16.msra.mxu0 0
    %552 = vmatprep.subr.bf16.mxu0 0
    %553 = vmatpush1.bf16.msra.mxu0 %v536
    %554 = vmatprep.subr.bf16.mxu0 0
    %555 = vmatpush2.bf16.msra.mxu0 0
    %556 = vmatprep.subr.bf16.mxu0 0
    %557 = vmatpush2.bf16.msra.mxu0 0
    %558 = vmatprep.subr.bf16.mxu0 0
    %559 = vmatpush2.bf16.msra.mxu0 0
    %560 = vmatprep.subr.bf16.mxu0 0
    %561 = vmatpush2.bf16.msra.mxu0 0
    %562 = vmatprep.subr.bf16.mxu0 0
    %563 = vmatpush2.bf16.msra.mxu0 0
    %564 = vmatprep.subr.bf16.mxu0 0
    %565 = vmatpush2.bf16.msra.mxu0 0
    %566 = vmatprep.subr.bf16.mxu0 0
    %567 = vmatpush2.bf16.msra.mxu0 0
    %568 = vmatprep.subr.bf16.mxu0 0
    %569 = vmatpush2.bf16.msra.mxu0 0
    %570 = vmatprep.mubr.bf16.mxu0 0
    %571 = vmatmul.mubr.bf16.gmra.mxu0 %v533
    %v572 = vpop.f32.mrf.mxu0
    %v573 = vadd.f32 0.0, %v572
    %v574 = vpop.f32.mrf.mxu0
    %v575 = vpop.f32.mrf.mxu0
    %v576 = vpop.f32.mrf.mxu0
    %577 = vdwg.mxu0
    %578 = vrot.lane.b32.xlu0 %v186, 64
    %v579 = vpop.permute.xlu0 %578
    %v581 = vsel %vm384, %v432, 0
    %v584 = vsel %vm438, %v579, 0
    %586 = vmatprep.subr.bf16.mxu0 0
    %587 = vmatpush1.bf16.msra.mxu0 0
    %588 = vmatprep.subr.bf16.mxu0 0
    %589 = vmatpush1.bf16.msra.mxu0 0
    %590 = vmatprep.subr.bf16.mxu0 0
    %591 = vmatpush1.bf16.msra.mxu0 0
    %592 = vmatprep.subr.bf16.mxu0 0
    %593 = vmatpush1.bf16.msra.mxu0 0
    %594 = vmatprep.subr.bf16.mxu0 0
    %595 = vmatpush1.bf16.msra.mxu0 0
    %596 = vmatprep.subr.bf16.mxu0 0
    %597 = vmatpush1.bf16.msra.mxu0 0
    %598 = vmatprep.subr.bf16.mxu0 0
    %599 = vmatpush1.bf16.msra.mxu0 0
    %600 = vmatprep.subr.bf16.mxu0 0
    %601 = vmatpush1.bf16.msra.mxu0 %v584
    %602 = vmatprep.subr.bf16.mxu0 0
    %603 = vmatpush2.bf16.msra.mxu0 0
    %604 = vmatprep.subr.bf16.mxu0 0
    %605 = vmatpush2.bf16.msra.mxu0 0
    %606 = vmatprep.subr.bf16.mxu0 0
    %607 = vmatpush2.bf16.msra.mxu0 0
    %608 = vmatprep.subr.bf16.mxu0 0
    %609 = vmatpush2.bf16.msra.mxu0 0
    %610 = vmatprep.subr.bf16.mxu0 0
    %611 = vmatpush2.bf16.msra.mxu0 0
    %612 = vmatprep.subr.bf16.mxu0 0
    %613 = vmatpush2.bf16.msra.mxu0 0
    %614 = vmatprep.subr.bf16.mxu0 0
    %615 = vmatpush2.bf16.msra.mxu0 0
    %616 = vmatprep.subr.bf16.mxu0 0
    %617 = vmatpush2.bf16.msra.mxu0 0
    %618 = vmatprep.mubr.bf16.mxu0 0
    %619 = vmatmul.mubr.bf16.gmra.mxu0 %v581
    %v620 = vpop.f32.mrf.mxu0
    %v621 = vadd.f32 0.0, %v620
    %v622 = vpop.f32.mrf.mxu0
    %v623 = vpop.f32.mrf.mxu0
    %v624 = vpop.f32.mrf.mxu0
    %625 = vdwg.mxu0
    %v626 = vpack.c.bf16 %v525, %v477
    %627 = vrot.lane.b32.xlu0 %v113, 32
    %v628 = vpop.permute.xlu0 %627
    %v631 = vsel %vm190, %v626, 0
    %633 = vmatprep.subr.bf16.mxu0 0
    %634 = vmatpush1.bf16.msra.mxu0 0
    %635 = vmatprep.subr.bf16.mxu0 0
    %636 = vmatpush1.bf16.msra.mxu0 0
    %637 = vmatprep.subr.bf16.mxu0 0
    %638 = vmatpush1.bf16.msra.mxu0 0
    %639 = vmatprep.subr.bf16.mxu0 0
    %640 = vmatpush1.bf16.msra.mxu0 0
    %641 = vmatprep.subr.bf16.mxu0 0
    %642 = vmatpush1.bf16.msra.mxu0 0
    %643 = vmatprep.subr.bf16.mxu0 0
    %644 = vmatpush1.bf16.msra.mxu0 0
    %645 = vmatprep.subr.bf16.mxu0 0
    %646 = vmatpush1.bf16.msra.mxu0 0
    %647 = vmatprep.subr.bf16.mxu0 0
    %648 = vmatpush1.bf16.msra.mxu0 %v628
    %649 = vmatprep.subr.bf16.mxu0 0
    %650 = vmatpush2.bf16.msra.mxu0 0
    %651 = vmatprep.subr.bf16.mxu0 0
    %652 = vmatpush2.bf16.msra.mxu0 0
    %653 = vmatprep.subr.bf16.mxu0 0
    %654 = vmatpush2.bf16.msra.mxu0 0
    %655 = vmatprep.subr.bf16.mxu0 0
    %656 = vmatpush2.bf16.msra.mxu0 0
    %657 = vmatprep.subr.bf16.mxu0 0
    %658 = vmatpush2.bf16.msra.mxu0 0
    %659 = vmatprep.subr.bf16.mxu0 0
    %660 = vmatpush2.bf16.msra.mxu0 0
    %661 = vmatprep.subr.bf16.mxu0 0
    %662 = vmatpush2.bf16.msra.mxu0 0
    %663 = vmatprep.subr.bf16.mxu0 0
    %664 = vmatpush2.bf16.msra.mxu0 0
    %665 = vmatprep.mubr.bf16.mxu0 0
    %666 = vmatmul.mubr.bf16.gmra.mxu0 %v631
    %v667 = vpop.f32.mrf.mxu0
    %v668 = vadd.f32 0.0, %v667
    %v669 = vpop.f32.mrf.mxu0
    %v670 = vpop.f32.mrf.mxu0
    %v671 = vadd.f32 0.0, %v670
    %v672 = vpop.f32.mrf.mxu0
    %673 = vdwg.mxu0
    %v674 = vlaneseq
    %v675 = vshrl.u32 %v674, 7
    %v676 = vsub.s32 1, %v675
    %v677 = vrot.slane %v83, %v676
    %v678 = vadd.f32 %v677, %v668
    %v679 = vadd.f32 %v677, %v671
    %v680 = vpack.c.bf16 %v621, %v573
    %681 = vrot.lane.b32.xlu0 %v114, 32
    %v682 = vpop.permute.xlu0 %681
    %v685 = vsel %vm190, %v680, 0
    %687 = vmatprep.subr.bf16.mxu0 0
    %688 = vmatpush1.bf16.msra.mxu0 0
    %689 = vmatprep.subr.bf16.mxu0 0
    %690 = vmatpush1.bf16.msra.mxu0 0
    %691 = vmatprep.subr.bf16.mxu0 0
    %692 = vmatpush1.bf16.msra.mxu0 0
    %693 = vmatprep.subr.bf16.mxu0 0
    %694 = vmatpush1.bf16.msra.mxu0 0
    %695 = vmatprep.subr.bf16.mxu0 0
    %696 = vmatpush1.bf16.msra.mxu0 0
    %697 = vmatprep.subr.bf16.mxu0 0
    %698 = vmatpush1.bf16.msra.mxu0 0
    %699 = vmatprep.subr.bf16.mxu0 0
    %700 = vmatpush1.bf16.msra.mxu0 0
    %701 = vmatprep.subr.bf16.mxu0 0
    %702 = vmatpush1.bf16.msra.mxu0 %v682
    %703 = vmatprep.subr.bf16.mxu0 0
    %704 = vmatpush2.bf16.msra.mxu0 0
    %705 = vmatprep.subr.bf16.mxu0 0
    %706 = vmatpush2.bf16.msra.mxu0 0
    %707 = vmatprep.subr.bf16.mxu0 0
    %708 = vmatpush2.bf16.msra.mxu0 0
    %709 = vmatprep.subr.bf16.mxu0 0
    %710 = vmatpush2.bf16.msra.mxu0 0
    %711 = vmatprep.subr.bf16.mxu0 0
    %712 = vmatpush2.bf16.msra.mxu0 0
    %713 = vmatprep.subr.bf16.mxu0 0
    %714 = vmatpush2.bf16.msra.mxu0 0
    %715 = vmatprep.subr.bf16.mxu0 0
    %716 = vmatpush2.bf16.msra.mxu0 0
    %717 = vmatprep.subr.bf16.mxu0 0
    %718 = vmatpush2.bf16.msra.mxu0 0
    %719 = vmatprep.mubr.bf16.mxu0 0
    %720 = vmatmul.mubr.bf16.gmra.mxu0 %v685
    %v721 = vpop.f32.mrf.mxu0
    %v722 = vadd.f32 0.0, %v721
    %v723 = vpop.f32.mrf.mxu0
    %v724 = vpop.f32.mrf.mxu0
    %v725 = vadd.f32 0.0, %v724
    %v726 = vpop.f32.mrf.mxu0
    %727 = vdwg.mxu0
    %v728 = vadd.f32 %v678, %v722
    %v729 = vadd.f32 %v679, %v725
    %v730 = vadd.f32 %v67, %v728
    %v731 = vadd.f32 %v68, %v729
    %v732 = vsel %vm29, %v730, 0.0
    %733 = vadd.xlane.f32.xlu0 %v732
    %v734 = vpop.xlane.xlu0 %733
    %v735 = vsel %vm29, %v731, 0.0
    %736 = vadd.xlane.f32.xlu0 %v735
    %v737 = vpop.xlane.xlu0 %736
    %v738 = vmul.f32 %v734, %v36
    %v739 = vmul.f32 %v737, %v36
    %v740 = vsub.f32 %v730, %v738
    %v741 = vsub.f32 %v731, %v739
    %v742 = vmul.f32 %v740, %v740
    %v743 = vmul.f32 %v741, %v741
    %v744 = vsel %vm29, %v742, 0.0
    %745 = vadd.xlane.f32.xlu0 %v744
    %v746 = vpop.xlane.xlu0 %745
    %v747 = vsel %vm29, %v743, 0.0
    %748 = vadd.xlane.f32.xlu0 %v747
    %v749 = vpop.xlane.xlu0 %748
    %v750 = vmul.f32 %v746, %v36
    %v751 = vmul.f32 %v749, %v36
    %v752 = vadd.f32 %v750, 1e-12
    %v753 = vadd.f32 %v751, 1e-12
    %v754 = vrsqrt.pop %v752
    %v755 = vrsqrt.pop %v753
    %v756 = vmul.f32 %v740, %v754
    %v757 = vmul.f32 %v741, %v755
    %v758 = vlaneseq
    %v759 = vshrl.u32 %v758, 7
    %v760 = vsub.s32 2, %v759
    %v761 = vrot.slane %v83, %v760
    %v762 = vmul.f32 %v756, %v761
    %v763 = vmul.f32 %v757, %v761
    %v764 = vlaneseq
    %v765 = vshrl.u32 %v764, 7
    %v766 = vsub.s32 3, %v765
    %v767 = vrot.slane %v83, %v766
    %v768 = vadd.f32 %v762, %v767
    %v769 = vadd.f32 %v763, %v767
    %v770 = vpack.c.bf16 %v769, %v768
    %v771 = vlaneseq
    %v772 = vshrl.u32 %v771, 7
    %v773 = vsub.s32 4, %v772
    %v774 = vrot.slane %v83, %v773
    %v779 = vunpack.c.l.b16 %v88
    %v780 = vunpack.c.l.b16 %v89
    %v781 = vunpack.c.l.b16 %v90
    %v782 = vunpack.c.l.b16 %v91
    %v783 = vpack.c.b16 %v780, %v779
    %v784 = vpack.c.b16 %v782, %v781
    %v788 = vsel %vm29, %v770, 0
    %790 = vmatprep.subr.bf16.mxu0 0
    %791 = vmatpush1.bf16.msra.mxu0 0
    %792 = vmatprep.subr.bf16.mxu0 0
    %793 = vmatpush1.bf16.msra.mxu0 0
    %794 = vmatprep.subr.bf16.mxu0 0
    %795 = vmatpush1.bf16.msra.mxu0 0
    %796 = vmatprep.subr.bf16.mxu0 0
    %797 = vmatpush1.bf16.msra.mxu0 0
    %798 = vmatprep.subr.bf16.mxu0 0
    %799 = vmatpush1.bf16.msra.mxu0 0
    %800 = vmatprep.subr.bf16.mxu0 0
    %801 = vmatpush1.bf16.msra.mxu0 0
    %802 = vmatprep.subr.bf16.mxu0 0
    %803 = vmatpush1.bf16.msra.mxu0 %v784
    %804 = vmatprep.subr.bf16.mxu0 0
    %805 = vmatpush1.bf16.msra.mxu0 %v783
    %806 = vmatprep.subr.bf16.mxu0 0
    %807 = vmatpush2.bf16.msra.mxu0 0
    %808 = vmatprep.subr.bf16.mxu0 0
    %809 = vmatpush2.bf16.msra.mxu0 0
    %810 = vmatprep.subr.bf16.mxu0 0
    %811 = vmatpush2.bf16.msra.mxu0 0
    %812 = vmatprep.subr.bf16.mxu0 0
    %813 = vmatpush2.bf16.msra.mxu0 0
    %814 = vmatprep.subr.bf16.mxu0 0
    %815 = vmatpush2.bf16.msra.mxu0 0
    %816 = vmatprep.subr.bf16.mxu0 0
    %817 = vmatpush2.bf16.msra.mxu0 0
    %818 = vmatprep.subr.bf16.mxu0 0
    %819 = vmatpush2.bf16.msra.mxu0 0
    %820 = vmatprep.subr.bf16.mxu0 0
    %821 = vmatpush2.bf16.msra.mxu0 0
    %822 = vmatprep.mubr.bf16.mxu0 0
    %823 = vmatmul.mubr.bf16.gmra.mxu0 %v788
    %v824 = vpop.f32.mrf.mxu0
    %v825 = vadd.f32 %v774, %v824
    %v826 = vpop.f32.mrf.mxu0
    %v827 = vpop.f32.mrf.mxu0
    %v828 = vadd.f32 %v774, %v827
    %v829 = vpop.f32.mrf.mxu0
    %830 = vdwg.mxu0
    %v831 = vmul.f32 %v825, %v825
    %v832 = vmul.f32 %v828, %v828
    %v833 = vmul.f32 %v825, %v831
    %v834 = vmul.f32 %v828, %v832
    %v835 = vmul.f32 %v833, 0.044715
    %v836 = vmul.f32 %v834, 0.044715
    %v837 = vadd.f32 %v825, %v835
    %v838 = vadd.f32 %v828, %v836
    %v839 = vmul.f32 %v837, 0.7978846
    %v840 = vmul.f32 %v838, 0.7978846
    %v841 = vtanh.pop %v839
    %v842 = vtanh.pop %v840
    %v843 = vadd.f32 %v841, 1.0
    %v844 = vadd.f32 %v842, 1.0
    %v845 = vmul.f32 %v843, 0.5
    %v846 = vmul.f32 %v844, 0.5
    %v847 = vmul.f32 %v825, %v845
    %v848 = vmul.f32 %v828, %v846
    %v849 = vpack.c.bf16 %v848, %v847
    %v850 = vlaneseq
    %v851 = vshrl.u32 %v850, 7
    %v852 = vsub.s32 5, %v851
    %v853 = vrot.slane %v83, %v852
    %v862 = vunpack.c.l.b16 %v92
    %v863 = vunpack.c.l.b16 %v93
    %v864 = vunpack.c.l.b16 %v94
    %v865 = vunpack.c.l.b16 %v95
    %v866 = vunpack.c.l.b16 %v96
    %v867 = vunpack.c.l.b16 %v97
    %v868 = vunpack.c.l.b16 %v98
    %v869 = vunpack.c.l.b16 %v99
    %v870 = vpack.c.b16 %v863, %v862
    %v871 = vpack.c.b16 %v865, %v864
    %v872 = vpack.c.b16 %v867, %v866
    %v873 = vpack.c.b16 %v869, %v868
    %vm878 = vcmask 523264
    %v880 = vsel %vm878, %v849, 0
    %882 = vmatprep.subr.bf16.mxu0 0
    %883 = vmatpush1.bf16.msra.mxu0 0
    %884 = vmatprep.subr.bf16.mxu0 0
    %885 = vmatpush1.bf16.msra.mxu0 0
    %886 = vmatprep.subr.bf16.mxu0 0
    %887 = vmatpush1.bf16.msra.mxu0 0
    %888 = vmatprep.subr.bf16.mxu0 0
    %889 = vmatpush1.bf16.msra.mxu0 0
    %890 = vmatprep.subr.bf16.mxu0 0
    %891 = vmatpush1.bf16.msra.mxu0 %v873
    %892 = vmatprep.subr.bf16.mxu0 0
    %893 = vmatpush1.bf16.msra.mxu0 %v872
    %894 = vmatprep.subr.bf16.mxu0 0
    %895 = vmatpush1.bf16.msra.mxu0 %v871
    %896 = vmatprep.subr.bf16.mxu0 0
    %897 = vmatpush1.bf16.msra.mxu0 %v870
    %898 = vmatprep.subr.bf16.mxu0 0
    %899 = vmatpush2.bf16.msra.mxu0 0
    %900 = vmatprep.subr.bf16.mxu0 0
    %901 = vmatpush2.bf16.msra.mxu0 0
    %902 = vmatprep.subr.bf16.mxu0 0
    %903 = vmatpush2.bf16.msra.mxu0 0
    %904 = vmatprep.subr.bf16.mxu0 0
    %905 = vmatpush2.bf16.msra.mxu0 0
    %906 = vmatprep.subr.bf16.mxu0 0
    %907 = vmatpush2.bf16.msra.mxu0 0
    %908 = vmatprep.subr.bf16.mxu0 0
    %909 = vmatpush2.bf16.msra.mxu0 0
    %910 = vmatprep.subr.bf16.mxu0 0
    %911 = vmatpush2.bf16.msra.mxu0 0
    %912 = vmatprep.subr.bf16.mxu0 0
    %913 = vmatpush2.bf16.msra.mxu0 0
    %914 = vmatprep.mubr.bf16.mxu0 0
    %915 = vmatmul.mubr.bf16.gmra.mxu0 %v880
    %v916 = vpop.f32.mrf.mxu0
    %v917 = vadd.f32 %v853, %v916
    %v918 = vpop.f32.mrf.mxu0
    %v919 = vpop.f32.mrf.mxu0
    %v920 = vadd.f32 %v853, %v919
    %v921 = vpop.f32.mrf.mxu0
    %922 = vdwg.mxu0
    %v923 = vadd.f32 %v768, %v917
    %v924 = vadd.f32 %v769, %v920
    %v925 = vsel %vm29, %v923, 0.0
    %926 = vadd.xlane.f32.xlu0 %v925
    %v927 = vpop.xlane.xlu0 %926
    %v928 = vsel %vm29, %v924, 0.0
    %929 = vadd.xlane.f32.xlu0 %v928
    %v930 = vpop.xlane.xlu0 %929
    %v931 = vmul.f32 %v927, %v36
    %v932 = vmul.f32 %v930, %v36
    %v933 = vsub.f32 %v923, %v931
    %v934 = vsub.f32 %v924, %v932
    %v935 = vmul.f32 %v933, %v933
    %v936 = vmul.f32 %v934, %v934
    %v937 = vsel %vm29, %v935, 0.0
    %938 = vadd.xlane.f32.xlu0 %v937
    %v939 = vpop.xlane.xlu0 %938
    %v940 = vsel %vm29, %v936, 0.0
    %941 = vadd.xlane.f32.xlu0 %v940
    %v942 = vpop.xlane.xlu0 %941
    %v943 = vmul.f32 %v939, %v36
    %v944 = vmul.f32 %v942, %v36
    %v945 = vadd.f32 %v943, 1e-12
    %v946 = vadd.f32 %v944, 1e-12
    %v947 = vrsqrt.pop %v945
    %v948 = vrsqrt.pop %v946
    %v949 = vmul.f32 %v933, %v947
    %v950 = vmul.f32 %v934, %v948
    %v951 = vlaneseq
    %v952 = vshrl.u32 %v951, 7
    %v953 = vsub.s32 6, %v952
    %v954 = vrot.slane %v83, %v953
    %v955 = vmul.f32 %v949, %v954
    %v956 = vmul.f32 %v950, %v954
    %v957 = vlaneseq
    %v958 = vshrl.u32 %v957, 7
    %v959 = vsub.s32 7, %v958
    %v960 = vrot.slane %v83, %v959
    %v961 = vadd.f32 %v955, %v960
    %v962 = vadd.f32 %v956, %v960
    %s963 = scalar_lea.vmem %s2, 8
    %v964 = vld [vmem:[%s963] sm:$0xff]
    %s965 = scalar_lea.vmem %s3, 16
    %v966 = vld [vmem:[%s965] sm:$0xf]
    %v967 = vld [vmem:[%s965 + $0x4] sm:$0xf]
    %v968 = vld [vmem:[%s965 + $0x8] sm:$0xf]
    %v969 = vld [vmem:[%s965 + $0xc] sm:$0xf]
    %s970 = scalar_lea.vmem %s4, 48
    %v971 = vld [vmem:[%s970] sm:$0xf]
    %v972 = vld [vmem:[%s970 + $0x4] sm:$0xf]
    %v973 = vld [vmem:[%s970 + $0x8] sm:$0xf]
    %v974 = vld [vmem:[%s970 + $0xc] sm:$0xf]
    %v975 = vld [vmem:[%s970 + $0x10] sm:$0xf]
    %v976 = vld [vmem:[%s970 + $0x14] sm:$0xf]
    %v977 = vld [vmem:[%s970 + $0x18] sm:$0xf]
    %v978 = vld [vmem:[%s970 + $0x1c] sm:$0xf]
    %v979 = vld [vmem:[%s970 + $0x20] sm:$0xf]
    %v980 = vld [vmem:[%s970 + $0x24] sm:$0xf]
    %v981 = vld [vmem:[%s970 + $0x28] sm:$0xf]
    %v982 = vld [vmem:[%s970 + $0x2c] sm:$0xf]
    %v983 = vpack.c.bf16 %v962, %v961
    %v984 = vlaneseq
    %v985 = vshrl.u32 %v984, 7
    %v986 = vsub.s32 0, %v985
    %v987 = vrot.slane %v964, %v986
    %v992 = vunpack.c.l.b16 %v966
    %v993 = vunpack.c.l.b16 %v967
    %v994 = vunpack.c.l.b16 %v968
    %v995 = vunpack.c.l.b16 %v969
    %v996 = vpack.c.b16 %v993, %v992
    %v997 = vpack.c.b16 %v995, %v994
    %v1001 = vsel %vm29, %v983, 0
    %1003 = vmatprep.subr.bf16.mxu0 0
    %1004 = vmatpush1.bf16.msra.mxu0 0
    %1005 = vmatprep.subr.bf16.mxu0 0
    %1006 = vmatpush1.bf16.msra.mxu0 0
    %1007 = vmatprep.subr.bf16.mxu0 0
    %1008 = vmatpush1.bf16.msra.mxu0 0
    %1009 = vmatprep.subr.bf16.mxu0 0
    %1010 = vmatpush1.bf16.msra.mxu0 0
    %1011 = vmatprep.subr.bf16.mxu0 0
    %1012 = vmatpush1.bf16.msra.mxu0 0
    %1013 = vmatprep.subr.bf16.mxu0 0
    %1014 = vmatpush1.bf16.msra.mxu0 0
    %1015 = vmatprep.subr.bf16.mxu0 0
    %1016 = vmatpush1.bf16.msra.mxu0 %v997
    %1017 = vmatprep.subr.bf16.mxu0 0
    %1018 = vmatpush1.bf16.msra.mxu0 %v996
    %1019 = vmatprep.subr.bf16.mxu0 0
    %1020 = vmatpush2.bf16.msra.mxu0 0
    %1021 = vmatprep.subr.bf16.mxu0 0
    %1022 = vmatpush2.bf16.msra.mxu0 0
    %1023 = vmatprep.subr.bf16.mxu0 0
    %1024 = vmatpush2.bf16.msra.mxu0 0
    %1025 = vmatprep.subr.bf16.mxu0 0
    %1026 = vmatpush2.bf16.msra.mxu0 0
    %1027 = vmatprep.subr.bf16.mxu0 0
    %1028 = vmatpush2.bf16.msra.mxu0 0
    %1029 = vmatprep.subr.bf16.mxu0 0
    %1030 = vmatpush2.bf16.msra.mxu0 0
    %1031 = vmatprep.subr.bf16.mxu0 0
    %1032 = vmatpush2.bf16.msra.mxu0 0
    %1033 = vmatprep.subr.bf16.mxu0 0
    %1034 = vmatpush2.bf16.msra.mxu0 0
    %1035 = vmatprep.mubr.bf16.mxu0 0
    %1036 = vmatmul.mubr.bf16.gmra.mxu0 %v1001
    %v1037 = vpop.f32.mrf.mxu0
    %v1038 = vadd.f32 %v987, %v1037
    %v1039 = vpop.f32.mrf.mxu0
    %v1040 = vpop.f32.mrf.mxu0
    %v1041 = vadd.f32 %v987, %v1040
    %v1042 = vpop.f32.mrf.mxu0
    %1043 = vdwg.mxu0
    %v1044 = vmul.f32 %v1038, 0.25
    %v1045 = vmul.f32 %v1041, 0.25
    %1048 = vrot.lane.b32.xlu0 %v1044, 112
    %v1049 = vpop.permute.xlu0 %1048
    %1050 = vrot.lane.b32.xlu0 %v1045, 112
    %v1051 = vpop.permute.xlu0 %1050
    %v1054 = vpack.c.bf16 %v1044, %v1044
    %v1055 = vpack.c.bf16 %v1045, %v1045
    %v1056 = vpack.c.bf16 %v1049, %v1049
    %v1057 = vpack.c.bf16 %v1051, %v1051
    %1060 = vrot.lane.b32.xlu0 %v1038, 112
    %v1061 = vpop.permute.xlu0 %1060
    %1062 = vrot.lane.b32.xlu0 %v1041, 112
    %v1063 = vpop.permute.xlu0 %1062
    %v1066 = vpack.c.bf16 %v1038, %v1038
    %v1067 = vpack.c.bf16 %v1041, %v1041
    %v1068 = vpack.c.bf16 %v1061, %v1061
    %v1069 = vpack.c.bf16 %v1063, %v1063
    %1071 = vrot.lane.b32.xlu0 %v1066, 96
    %v1072 = vpop.permute.xlu0 %1071
    %v1074 = vsel %vm190, %v1054, 0
    %v1077 = vsel %vm190, %v1072, 0
    %1079 = vmatprep.subr.bf16.mxu0 0
    %1080 = vmatpush1.bf16.xpose.msra.mxu0 0
    %1081 = vmatprep.subr.bf16.mxu0 0
    %1082 = vmatpush1.bf16.xpose.msra.mxu0 0
    %1083 = vmatprep.subr.bf16.mxu0 0
    %1084 = vmatpush1.bf16.xpose.msra.mxu0 0
    %1085 = vmatprep.subr.bf16.mxu0 0
    %1086 = vmatpush1.bf16.xpose.msra.mxu0 0
    %1087 = vmatprep.subr.bf16.mxu0 0
    %1088 = vmatpush1.bf16.xpose.msra.mxu0 0
    %1089 = vmatprep.subr.bf16.mxu0 0
    %1090 = vmatpush1.bf16.xpose.msra.mxu0 0
    %1091 = vmatprep.subr.bf16.mxu0 0
    %1092 = vmatpush1.bf16.xpose.msra.mxu0 0
    %1093 = vmatprep.subr.bf16.mxu0 0
    %1094 = vmatpush1.bf16.xpose.msra.mxu0 %v1077
    %1095 = vmatprep.subr.bf16.mxu0 0
    %1096 = vmatpush2.bf16.xpose.msra.mxu0 0
    %1097 = vmatprep.subr.bf16.mxu0 0
    %1098 = vmatpush2.bf16.xpose.msra.mxu0 0
    %1099 = vmatprep.subr.bf16.mxu0 0
    %1100 = vmatpush2.bf16.xpose.msra.mxu0 0
    %1101 = vmatprep.subr.bf16.mxu0 0
    %1102 = vmatpush2.bf16.xpose.msra.mxu0 0
    %1103 = vmatprep.subr.bf16.mxu0 0
    %1104 = vmatpush2.bf16.xpose.msra.mxu0 0
    %1105 = vmatprep.subr.bf16.mxu0 0
    %1106 = vmatpush2.bf16.xpose.msra.mxu0 0
    %1107 = vmatprep.subr.bf16.mxu0 0
    %1108 = vmatpush2.bf16.xpose.msra.mxu0 0
    %1109 = vmatprep.subr.bf16.mxu0 0
    %1110 = vmatpush2.bf16.xpose.msra.mxu0 0
    %1111 = vmatprep.mubr.bf16.mxu0 0
    %1112 = vmatmul.mubr.bf16.gmra.mxu0 %v1074
    %v1113 = vpop.f32.mrf.mxu0
    %v1114 = vadd.f32 %v76, %v1113
    %v1115 = vpop.f32.mrf.mxu0
    %v1116 = vpop.f32.mrf.mxu0
    %v1117 = vpop.f32.mrf.mxu0
    %1118 = vdwg.mxu0
    %1120 = vrot.lane.b32.xlu0 %v1067, 96
    %v1121 = vpop.permute.xlu0 %1120
    %v1123 = vsel %vm190, %v1055, 0
    %v1126 = vsel %vm190, %v1121, 0
    %1128 = vmatprep.subr.bf16.mxu0 0
    %1129 = vmatpush1.bf16.xpose.msra.mxu0 0
    %1130 = vmatprep.subr.bf16.mxu0 0
    %1131 = vmatpush1.bf16.xpose.msra.mxu0 0
    %1132 = vmatprep.subr.bf16.mxu0 0
    %1133 = vmatpush1.bf16.xpose.msra.mxu0 0
    %1134 = vmatprep.subr.bf16.mxu0 0
    %1135 = vmatpush1.bf16.xpose.msra.mxu0 0
    %1136 = vmatprep.subr.bf16.mxu0 0
    %1137 = vmatpush1.bf16.xpose.msra.mxu0 0
    %1138 = vmatprep.subr.bf16.mxu0 0
    %1139 = vmatpush1.bf16.xpose.msra.mxu0 0
    %1140 = vmatprep.subr.bf16.mxu0 0
    %1141 = vmatpush1.bf16.xpose.msra.mxu0 0
    %1142 = vmatprep.subr.bf16.mxu0 0
    %1143 = vmatpush1.bf16.xpose.msra.mxu0 %v1126
    %1144 = vmatprep.subr.bf16.mxu0 0
    %1145 = vmatpush2.bf16.xpose.msra.mxu0 0
    %1146 = vmatprep.subr.bf16.mxu0 0
    %1147 = vmatpush2.bf16.xpose.msra.mxu0 0
    %1148 = vmatprep.subr.bf16.mxu0 0
    %1149 = vmatpush2.bf16.xpose.msra.mxu0 0
    %1150 = vmatprep.subr.bf16.mxu0 0
    %1151 = vmatpush2.bf16.xpose.msra.mxu0 0
    %1152 = vmatprep.subr.bf16.mxu0 0
    %1153 = vmatpush2.bf16.xpose.msra.mxu0 0
    %1154 = vmatprep.subr.bf16.mxu0 0
    %1155 = vmatpush2.bf16.xpose.msra.mxu0 0
    %1156 = vmatprep.subr.bf16.mxu0 0
    %1157 = vmatpush2.bf16.xpose.msra.mxu0 0
    %1158 = vmatprep.subr.bf16.mxu0 0
    %1159 = vmatpush2.bf16.xpose.msra.mxu0 0
    %1160 = vmatprep.mubr.bf16.mxu0 0
    %1161 = vmatmul.mubr.bf16.gmra.mxu0 %v1123
    %v1162 = vpop.f32.mrf.mxu0
    %v1163 = vadd.f32 %v80, %v1162
    %v1164 = vpop.f32.mrf.mxu0
    %v1165 = vpop.f32.mrf.mxu0
    %v1166 = vpop.f32.mrf.mxu0
    %1167 = vdwg.mxu0
    %1169 = vrot.lane.b32.xlu0 %v1068, 96
    %v1170 = vpop.permute.xlu0 %1169
    %v1172 = vsel %vm190, %v1056, 0
    %v1175 = vsel %vm190, %v1170, 0
    %1177 = vmatprep.subr.bf16.mxu0 0
    %1178 = vmatpush1.bf16.xpose.msra.mxu0 0
    %1179 = vmatprep.subr.bf16.mxu0 0
    %1180 = vmatpush1.bf16.xpose.msra.mxu0 0
    %1181 = vmatprep.subr.bf16.mxu0 0
    %1182 = vmatpush1.bf16.xpose.msra.mxu0 0
    %1183 = vmatprep.subr.bf16.mxu0 0
    %1184 = vmatpush1.bf16.xpose.msra.mxu0 0
    %1185 = vmatprep.subr.bf16.mxu0 0
    %1186 = vmatpush1.bf16.xpose.msra.mxu0 0
    %1187 = vmatprep.subr.bf16.mxu0 0
    %1188 = vmatpush1.bf16.xpose.msra.mxu0 0
    %1189 = vmatprep.subr.bf16.mxu0 0
    %1190 = vmatpush1.bf16.xpose.msra.mxu0 0
    %1191 = vmatprep.subr.bf16.mxu0 0
    %1192 = vmatpush1.bf16.xpose.msra.mxu0 %v1175
    %1193 = vmatprep.subr.bf16.mxu0 0
    %1194 = vmatpush2.bf16.xpose.msra.mxu0 0
    %1195 = vmatprep.subr.bf16.mxu0 0
    %1196 = vmatpush2.bf16.xpose.msra.mxu0 0
    %1197 = vmatprep.subr.bf16.mxu0 0
    %1198 = vmatpush2.bf16.xpose.msra.mxu0 0
    %1199 = vmatprep.subr.bf16.mxu0 0
    %1200 = vmatpush2.bf16.xpose.msra.mxu0 0
    %1201 = vmatprep.subr.bf16.mxu0 0
    %1202 = vmatpush2.bf16.xpose.msra.mxu0 0
    %1203 = vmatprep.subr.bf16.mxu0 0
    %1204 = vmatpush2.bf16.xpose.msra.mxu0 0
    %1205 = vmatprep.subr.bf16.mxu0 0
    %1206 = vmatpush2.bf16.xpose.msra.mxu0 0
    %1207 = vmatprep.subr.bf16.mxu0 0
    %1208 = vmatpush2.bf16.xpose.msra.mxu0 0
    %1209 = vmatprep.mubr.bf16.mxu0 0
    %1210 = vmatmul.mubr.bf16.gmra.mxu0 %v1172
    %v1211 = vpop.f32.mrf.mxu0
    %v1212 = vadd.f32 %v76, %v1211
    %v1213 = vpop.f32.mrf.mxu0
    %v1214 = vpop.f32.mrf.mxu0
    %v1215 = vpop.f32.mrf.mxu0
    %1216 = vdwg.mxu0
    %1218 = vrot.lane.b32.xlu0 %v1069, 96
    %v1219 = vpop.permute.xlu0 %1218
    %v1221 = vsel %vm190, %v1057, 0
    %v1224 = vsel %vm190, %v1219, 0
    %1226 = vmatprep.subr.bf16.mxu0 0
    %1227 = vmatpush1.bf16.xpose.msra.mxu0 0
    %1228 = vmatprep.subr.bf16.mxu0 0
    %1229 = vmatpush1.bf16.xpose.msra.mxu0 0
    %1230 = vmatprep.subr.bf16.mxu0 0
    %1231 = vmatpush1.bf16.xpose.msra.mxu0 0
    %1232 = vmatprep.subr.bf16.mxu0 0
    %1233 = vmatpush1.bf16.xpose.msra.mxu0 0
    %1234 = vmatprep.subr.bf16.mxu0 0
    %1235 = vmatpush1.bf16.xpose.msra.mxu0 0
    %1236 = vmatprep.subr.bf16.mxu0 0
    %1237 = vmatpush1.bf16.xpose.msra.mxu0 0
    %1238 = vmatprep.subr.bf16.mxu0 0
    %1239 = vmatpush1.bf16.xpose.msra.mxu0 0
    %1240 = vmatprep.subr.bf16.mxu0 0
    %1241 = vmatpush1.bf16.xpose.msra.mxu0 %v1224
    %1242 = vmatprep.subr.bf16.mxu0 0
    %1243 = vmatpush2.bf16.xpose.msra.mxu0 0
    %1244 = vmatprep.subr.bf16.mxu0 0
    %1245 = vmatpush2.bf16.xpose.msra.mxu0 0
    %1246 = vmatprep.subr.bf16.mxu0 0
    %1247 = vmatpush2.bf16.xpose.msra.mxu0 0
    %1248 = vmatprep.subr.bf16.mxu0 0
    %1249 = vmatpush2.bf16.xpose.msra.mxu0 0
    %1250 = vmatprep.subr.bf16.mxu0 0
    %1251 = vmatpush2.bf16.xpose.msra.mxu0 0
    %1252 = vmatprep.subr.bf16.mxu0 0
    %1253 = vmatpush2.bf16.xpose.msra.mxu0 0
    %1254 = vmatprep.subr.bf16.mxu0 0
    %1255 = vmatpush2.bf16.xpose.msra.mxu0 0
    %1256 = vmatprep.subr.bf16.mxu0 0
    %1257 = vmatpush2.bf16.xpose.msra.mxu0 0
    %1258 = vmatprep.mubr.bf16.mxu0 0
    %1259 = vmatmul.mubr.bf16.gmra.mxu0 %v1221
    %v1260 = vpop.f32.mrf.mxu0
    %v1261 = vadd.f32 %v80, %v1260
    %v1262 = vpop.f32.mrf.mxu0
    %v1263 = vpop.f32.mrf.mxu0
    %v1264 = vpop.f32.mrf.mxu0
    %1265 = vdwg.mxu0
    %v1266 = vsel %vm384, %v1114, -inf
    %1267 = vmax.xlane.f32.xlu0 %v1266
    %v1268 = vpop.xlane.xlu0 %1267
    %v1269 = vsel %vm384, %v1163, -inf
    %1270 = vmax.xlane.f32.xlu0 %v1269
    %v1271 = vpop.xlane.xlu0 %1270
    %v1272 = vsel %vm384, %v1212, -inf
    %1273 = vmax.xlane.f32.xlu0 %v1272
    %v1274 = vpop.xlane.xlu0 %1273
    %v1275 = vsel %vm384, %v1261, -inf
    %1276 = vmax.xlane.f32.xlu0 %v1275
    %v1277 = vpop.xlane.xlu0 %1276
    %v1278 = vsub.f32 %v1114, %v1268
    %v1279 = vsub.f32 %v1163, %v1271
    %v1280 = vsub.f32 %v1212, %v1274
    %v1281 = vsub.f32 %v1261, %v1277
    %v1282 = vmul.f32 %v1278, 1.442695
    %v1283 = vpow.pop %v1282
    %v1284 = vmul.f32 %v1279, 1.442695
    %v1285 = vpow.pop %v1284
    %v1286 = vmul.f32 %v1280, 1.442695
    %v1287 = vpow.pop %v1286
    %v1288 = vmul.f32 %v1281, 1.442695
    %v1289 = vpow.pop %v1288
    %v1290 = vsel %vm384, %v1283, 0.0
    %1291 = vadd.xlane.f32.xlu0 %v1290
    %v1292 = vpop.xlane.xlu0 %1291
    %v1293 = vsel %vm384, %v1285, 0.0
    %1294 = vadd.xlane.f32.xlu0 %v1293
    %v1295 = vpop.xlane.xlu0 %1294
    %v1296 = vsel %vm384, %v1287, 0.0
    %1297 = vadd.xlane.f32.xlu0 %v1296
    %v1298 = vpop.xlane.xlu0 %1297
    %v1299 = vsel %vm384, %v1289, 0.0
    %1300 = vadd.xlane.f32.xlu0 %v1299
    %v1301 = vpop.xlane.xlu0 %1300
    %v1302 = vrcp.pop %v1292
    %v1303 = vrcp.pop %v1295
    %v1304 = vrcp.pop %v1298
    %v1305 = vrcp.pop %v1301
    %v1306 = vmul.f32 %v1283, %v1302
    %v1307 = vmul.f32 %v1285, %v1303
    %v1308 = vmul.f32 %v1287, %v1304
    %v1309 = vmul.f32 %v1289, %v1305
    %v1310 = vpack.c.bf16 %v1306, %v1306
    %v1311 = vpack.c.bf16 %v1307, %v1307
    %v1312 = vpack.c.bf16 %v1308, %v1308
    %v1313 = vpack.c.bf16 %v1309, %v1309
    %1314 = vrot.lane.b32.xlu0 %v1066, 64
    %v1315 = vpop.permute.xlu0 %1314
    %v1317 = vsel %vm384, %v1310, 0
    %v1320 = vsel %vm438, %v1315, 0
    %1322 = vmatprep.subr.bf16.mxu0 0
    %1323 = vmatpush1.bf16.msra.mxu0 0
    %1324 = vmatprep.subr.bf16.mxu0 0
    %1325 = vmatpush1.bf16.msra.mxu0 0
    %1326 = vmatprep.subr.bf16.mxu0 0
    %1327 = vmatpush1.bf16.msra.mxu0 0
    %1328 = vmatprep.subr.bf16.mxu0 0
    %1329 = vmatpush1.bf16.msra.mxu0 0
    %1330 = vmatprep.subr.bf16.mxu0 0
    %1331 = vmatpush1.bf16.msra.mxu0 0
    %1332 = vmatprep.subr.bf16.mxu0 0
    %1333 = vmatpush1.bf16.msra.mxu0 0
    %1334 = vmatprep.subr.bf16.mxu0 0
    %1335 = vmatpush1.bf16.msra.mxu0 0
    %1336 = vmatprep.subr.bf16.mxu0 0
    %1337 = vmatpush1.bf16.msra.mxu0 %v1320
    %1338 = vmatprep.subr.bf16.mxu0 0
    %1339 = vmatpush2.bf16.msra.mxu0 0
    %1340 = vmatprep.subr.bf16.mxu0 0
    %1341 = vmatpush2.bf16.msra.mxu0 0
    %1342 = vmatprep.subr.bf16.mxu0 0
    %1343 = vmatpush2.bf16.msra.mxu0 0
    %1344 = vmatprep.subr.bf16.mxu0 0
    %1345 = vmatpush2.bf16.msra.mxu0 0
    %1346 = vmatprep.subr.bf16.mxu0 0
    %1347 = vmatpush2.bf16.msra.mxu0 0
    %1348 = vmatprep.subr.bf16.mxu0 0
    %1349 = vmatpush2.bf16.msra.mxu0 0
    %1350 = vmatprep.subr.bf16.mxu0 0
    %1351 = vmatpush2.bf16.msra.mxu0 0
    %1352 = vmatprep.subr.bf16.mxu0 0
    %1353 = vmatpush2.bf16.msra.mxu0 0
    %1354 = vmatprep.mubr.bf16.mxu0 0
    %1355 = vmatmul.mubr.bf16.gmra.mxu0 %v1317
    %v1356 = vpop.f32.mrf.mxu0
    %v1357 = vadd.f32 0.0, %v1356
    %v1358 = vpop.f32.mrf.mxu0
    %v1359 = vpop.f32.mrf.mxu0
    %v1360 = vpop.f32.mrf.mxu0
    %1361 = vdwg.mxu0
    %1362 = vrot.lane.b32.xlu0 %v1067, 64
    %v1363 = vpop.permute.xlu0 %1362
    %v1365 = vsel %vm384, %v1311, 0
    %v1368 = vsel %vm438, %v1363, 0
    %1370 = vmatprep.subr.bf16.mxu0 0
    %1371 = vmatpush1.bf16.msra.mxu0 0
    %1372 = vmatprep.subr.bf16.mxu0 0
    %1373 = vmatpush1.bf16.msra.mxu0 0
    %1374 = vmatprep.subr.bf16.mxu0 0
    %1375 = vmatpush1.bf16.msra.mxu0 0
    %1376 = vmatprep.subr.bf16.mxu0 0
    %1377 = vmatpush1.bf16.msra.mxu0 0
    %1378 = vmatprep.subr.bf16.mxu0 0
    %1379 = vmatpush1.bf16.msra.mxu0 0
    %1380 = vmatprep.subr.bf16.mxu0 0
    %1381 = vmatpush1.bf16.msra.mxu0 0
    %1382 = vmatprep.subr.bf16.mxu0 0
    %1383 = vmatpush1.bf16.msra.mxu0 0
    %1384 = vmatprep.subr.bf16.mxu0 0
    %1385 = vmatpush1.bf16.msra.mxu0 %v1368
    %1386 = vmatprep.subr.bf16.mxu0 0
    %1387 = vmatpush2.bf16.msra.mxu0 0
    %1388 = vmatprep.subr.bf16.mxu0 0
    %1389 = vmatpush2.bf16.msra.mxu0 0
    %1390 = vmatprep.subr.bf16.mxu0 0
    %1391 = vmatpush2.bf16.msra.mxu0 0
    %1392 = vmatprep.subr.bf16.mxu0 0
    %1393 = vmatpush2.bf16.msra.mxu0 0
    %1394 = vmatprep.subr.bf16.mxu0 0
    %1395 = vmatpush2.bf16.msra.mxu0 0
    %1396 = vmatprep.subr.bf16.mxu0 0
    %1397 = vmatpush2.bf16.msra.mxu0 0
    %1398 = vmatprep.subr.bf16.mxu0 0
    %1399 = vmatpush2.bf16.msra.mxu0 0
    %1400 = vmatprep.subr.bf16.mxu0 0
    %1401 = vmatpush2.bf16.msra.mxu0 0
    %1402 = vmatprep.mubr.bf16.mxu0 0
    %1403 = vmatmul.mubr.bf16.gmra.mxu0 %v1365
    %v1404 = vpop.f32.mrf.mxu0
    %v1405 = vadd.f32 0.0, %v1404
    %v1406 = vpop.f32.mrf.mxu0
    %v1407 = vpop.f32.mrf.mxu0
    %v1408 = vpop.f32.mrf.mxu0
    %1409 = vdwg.mxu0
    %1410 = vrot.lane.b32.xlu0 %v1068, 64
    %v1411 = vpop.permute.xlu0 %1410
    %v1413 = vsel %vm384, %v1312, 0
    %v1416 = vsel %vm438, %v1411, 0
    %1418 = vmatprep.subr.bf16.mxu0 0
    %1419 = vmatpush1.bf16.msra.mxu0 0
    %1420 = vmatprep.subr.bf16.mxu0 0
    %1421 = vmatpush1.bf16.msra.mxu0 0
    %1422 = vmatprep.subr.bf16.mxu0 0
    %1423 = vmatpush1.bf16.msra.mxu0 0
    %1424 = vmatprep.subr.bf16.mxu0 0
    %1425 = vmatpush1.bf16.msra.mxu0 0
    %1426 = vmatprep.subr.bf16.mxu0 0
    %1427 = vmatpush1.bf16.msra.mxu0 0
    %1428 = vmatprep.subr.bf16.mxu0 0
    %1429 = vmatpush1.bf16.msra.mxu0 0
    %1430 = vmatprep.subr.bf16.mxu0 0
    %1431 = vmatpush1.bf16.msra.mxu0 0
    %1432 = vmatprep.subr.bf16.mxu0 0
    %1433 = vmatpush1.bf16.msra.mxu0 %v1416
    %1434 = vmatprep.subr.bf16.mxu0 0
    %1435 = vmatpush2.bf16.msra.mxu0 0
    %1436 = vmatprep.subr.bf16.mxu0 0
    %1437 = vmatpush2.bf16.msra.mxu0 0
    %1438 = vmatprep.subr.bf16.mxu0 0
    %1439 = vmatpush2.bf16.msra.mxu0 0
    %1440 = vmatprep.subr.bf16.mxu0 0
    %1441 = vmatpush2.bf16.msra.mxu0 0
    %1442 = vmatprep.subr.bf16.mxu0 0
    %1443 = vmatpush2.bf16.msra.mxu0 0
    %1444 = vmatprep.subr.bf16.mxu0 0
    %1445 = vmatpush2.bf16.msra.mxu0 0
    %1446 = vmatprep.subr.bf16.mxu0 0
    %1447 = vmatpush2.bf16.msra.mxu0 0
    %1448 = vmatprep.subr.bf16.mxu0 0
    %1449 = vmatpush2.bf16.msra.mxu0 0
    %1450 = vmatprep.mubr.bf16.mxu0 0
    %1451 = vmatmul.mubr.bf16.gmra.mxu0 %v1413
    %v1452 = vpop.f32.mrf.mxu0
    %v1453 = vadd.f32 0.0, %v1452
    %v1454 = vpop.f32.mrf.mxu0
    %v1455 = vpop.f32.mrf.mxu0
    %v1456 = vpop.f32.mrf.mxu0
    %1457 = vdwg.mxu0
    %1458 = vrot.lane.b32.xlu0 %v1069, 64
    %v1459 = vpop.permute.xlu0 %1458
    %v1461 = vsel %vm384, %v1313, 0
    %v1464 = vsel %vm438, %v1459, 0
    %1466 = vmatprep.subr.bf16.mxu0 0
    %1467 = vmatpush1.bf16.msra.mxu0 0
    %1468 = vmatprep.subr.bf16.mxu0 0
    %1469 = vmatpush1.bf16.msra.mxu0 0
    %1470 = vmatprep.subr.bf16.mxu0 0
    %1471 = vmatpush1.bf16.msra.mxu0 0
    %1472 = vmatprep.subr.bf16.mxu0 0
    %1473 = vmatpush1.bf16.msra.mxu0 0
    %1474 = vmatprep.subr.bf16.mxu0 0
    %1475 = vmatpush1.bf16.msra.mxu0 0
    %1476 = vmatprep.subr.bf16.mxu0 0
    %1477 = vmatpush1.bf16.msra.mxu0 0
    %1478 = vmatprep.subr.bf16.mxu0 0
    %1479 = vmatpush1.bf16.msra.mxu0 0
    %1480 = vmatprep.subr.bf16.mxu0 0
    %1481 = vmatpush1.bf16.msra.mxu0 %v1464
    %1482 = vmatprep.subr.bf16.mxu0 0
    %1483 = vmatpush2.bf16.msra.mxu0 0
    %1484 = vmatprep.subr.bf16.mxu0 0
    %1485 = vmatpush2.bf16.msra.mxu0 0
    %1486 = vmatprep.subr.bf16.mxu0 0
    %1487 = vmatpush2.bf16.msra.mxu0 0
    %1488 = vmatprep.subr.bf16.mxu0 0
    %1489 = vmatpush2.bf16.msra.mxu0 0
    %1490 = vmatprep.subr.bf16.mxu0 0
    %1491 = vmatpush2.bf16.msra.mxu0 0
    %1492 = vmatprep.subr.bf16.mxu0 0
    %1493 = vmatpush2.bf16.msra.mxu0 0
    %1494 = vmatprep.subr.bf16.mxu0 0
    %1495 = vmatpush2.bf16.msra.mxu0 0
    %1496 = vmatprep.subr.bf16.mxu0 0
    %1497 = vmatpush2.bf16.msra.mxu0 0
    %1498 = vmatprep.mubr.bf16.mxu0 0
    %1499 = vmatmul.mubr.bf16.gmra.mxu0 %v1461
    %v1500 = vpop.f32.mrf.mxu0
    %v1501 = vadd.f32 0.0, %v1500
    %v1502 = vpop.f32.mrf.mxu0
    %v1503 = vpop.f32.mrf.mxu0
    %v1504 = vpop.f32.mrf.mxu0
    %1505 = vdwg.mxu0
    %v1506 = vpack.c.bf16 %v1405, %v1357
    %1507 = vrot.lane.b32.xlu0 %v996, 32
    %v1508 = vpop.permute.xlu0 %1507
    %v1511 = vsel %vm190, %v1506, 0
    %1513 = vmatprep.subr.bf16.mxu0 0
    %1514 = vmatpush1.bf16.msra.mxu0 0
    %1515 = vmatprep.subr.bf16.mxu0 0
    %1516 = vmatpush1.bf16.msra.mxu0 0
    %1517 = vmatprep.subr.bf16.mxu0 0
    %1518 = vmatpush1.bf16.msra.mxu0 0
    %1519 = vmatprep.subr.bf16.mxu0 0
    %1520 = vmatpush1.bf16.msra.mxu0 0
    %1521 = vmatprep.subr.bf16.mxu0 0
    %1522 = vmatpush1.bf16.msra.mxu0 0
    %1523 = vmatprep.subr.bf16.mxu0 0
    %1524 = vmatpush1.bf16.msra.mxu0 0
    %1525 = vmatprep.subr.bf16.mxu0 0
    %1526 = vmatpush1.bf16.msra.mxu0 0
    %1527 = vmatprep.subr.bf16.mxu0 0
    %1528 = vmatpush1.bf16.msra.mxu0 %v1508
    %1529 = vmatprep.subr.bf16.mxu0 0
    %1530 = vmatpush2.bf16.msra.mxu0 0
    %1531 = vmatprep.subr.bf16.mxu0 0
    %1532 = vmatpush2.bf16.msra.mxu0 0
    %1533 = vmatprep.subr.bf16.mxu0 0
    %1534 = vmatpush2.bf16.msra.mxu0 0
    %1535 = vmatprep.subr.bf16.mxu0 0
    %1536 = vmatpush2.bf16.msra.mxu0 0
    %1537 = vmatprep.subr.bf16.mxu0 0
    %1538 = vmatpush2.bf16.msra.mxu0 0
    %1539 = vmatprep.subr.bf16.mxu0 0
    %1540 = vmatpush2.bf16.msra.mxu0 0
    %1541 = vmatprep.subr.bf16.mxu0 0
    %1542 = vmatpush2.bf16.msra.mxu0 0
    %1543 = vmatprep.subr.bf16.mxu0 0
    %1544 = vmatpush2.bf16.msra.mxu0 0
    %1545 = vmatprep.mubr.bf16.mxu0 0
    %1546 = vmatmul.mubr.bf16.gmra.mxu0 %v1511
    %v1547 = vpop.f32.mrf.mxu0
    %v1548 = vadd.f32 0.0, %v1547
    %v1549 = vpop.f32.mrf.mxu0
    %v1550 = vpop.f32.mrf.mxu0
    %v1551 = vadd.f32 0.0, %v1550
    %v1552 = vpop.f32.mrf.mxu0
    %1553 = vdwg.mxu0
    %v1554 = vlaneseq
    %v1555 = vshrl.u32 %v1554, 7
    %v1556 = vsub.s32 1, %v1555
    %v1557 = vrot.slane %v964, %v1556
    %v1558 = vadd.f32 %v1557, %v1548
    %v1559 = vadd.f32 %v1557, %v1551
    %v1560 = vpack.c.bf16 %v1501, %v1453
    %1561 = vrot.lane.b32.xlu0 %v997, 32
    %v1562 = vpop.permute.xlu0 %1561
    %v1565 = vsel %vm190, %v1560, 0
    %1567 = vmatprep.subr.bf16.mxu0 0
    %1568 = vmatpush1.bf16.msra.mxu0 0
    %1569 = vmatprep.subr.bf16.mxu0 0
    %1570 = vmatpush1.bf16.msra.mxu0 0
    %1571 = vmatprep.subr.bf16.mxu0 0
    %1572 = vmatpush1.bf16.msra.mxu0 0
    %1573 = vmatprep.subr.bf16.mxu0 0
    %1574 = vmatpush1.bf16.msra.mxu0 0
    %1575 = vmatprep.subr.bf16.mxu0 0
    %1576 = vmatpush1.bf16.msra.mxu0 0
    %1577 = vmatprep.subr.bf16.mxu0 0
    %1578 = vmatpush1.bf16.msra.mxu0 0
    %1579 = vmatprep.subr.bf16.mxu0 0
    %1580 = vmatpush1.bf16.msra.mxu0 0
    %1581 = vmatprep.subr.bf16.mxu0 0
    %1582 = vmatpush1.bf16.msra.mxu0 %v1562
    %1583 = vmatprep.subr.bf16.mxu0 0
    %1584 = vmatpush2.bf16.msra.mxu0 0
    %1585 = vmatprep.subr.bf16.mxu0 0
    %1586 = vmatpush2.bf16.msra.mxu0 0
    %1587 = vmatprep.subr.bf16.mxu0 0
    %1588 = vmatpush2.bf16.msra.mxu0 0
    %1589 = vmatprep.subr.bf16.mxu0 0
    %1590 = vmatpush2.bf16.msra.mxu0 0
    %1591 = vmatprep.subr.bf16.mxu0 0
    %1592 = vmatpush2.bf16.msra.mxu0 0
    %1593 = vmatprep.subr.bf16.mxu0 0
    %1594 = vmatpush2.bf16.msra.mxu0 0
    %1595 = vmatprep.subr.bf16.mxu0 0
    %1596 = vmatpush2.bf16.msra.mxu0 0
    %1597 = vmatprep.subr.bf16.mxu0 0
    %1598 = vmatpush2.bf16.msra.mxu0 0
    %1599 = vmatprep.mubr.bf16.mxu0 0
    %1600 = vmatmul.mubr.bf16.gmra.mxu0 %v1565
    %v1601 = vpop.f32.mrf.mxu0
    %v1602 = vadd.f32 0.0, %v1601
    %v1603 = vpop.f32.mrf.mxu0
    %v1604 = vpop.f32.mrf.mxu0
    %v1605 = vadd.f32 0.0, %v1604
    %v1606 = vpop.f32.mrf.mxu0
    %1607 = vdwg.mxu0
    %v1608 = vadd.f32 %v1558, %v1602
    %v1609 = vadd.f32 %v1559, %v1605
    %v1610 = vadd.f32 %v961, %v1608
    %v1611 = vadd.f32 %v962, %v1609
    %v1612 = vsel %vm29, %v1610, 0.0
    %1613 = vadd.xlane.f32.xlu0 %v1612
    %v1614 = vpop.xlane.xlu0 %1613
    %v1615 = vsel %vm29, %v1611, 0.0
    %1616 = vadd.xlane.f32.xlu0 %v1615
    %v1617 = vpop.xlane.xlu0 %1616
    %v1618 = vmul.f32 %v1614, %v36
    %v1619 = vmul.f32 %v1617, %v36
    %v1620 = vsub.f32 %v1610, %v1618
    %v1621 = vsub.f32 %v1611, %v1619
    %v1622 = vmul.f32 %v1620, %v1620
    %v1623 = vmul.f32 %v1621, %v1621
    %v1624 = vsel %vm29, %v1622, 0.0
    %1625 = vadd.xlane.f32.xlu0 %v1624
    %v1626 = vpop.xlane.xlu0 %1625
    %v1627 = vsel %vm29, %v1623, 0.0
    %1628 = vadd.xlane.f32.xlu0 %v1627
    %v1629 = vpop.xlane.xlu0 %1628
    %v1630 = vmul.f32 %v1626, %v36
    %v1631 = vmul.f32 %v1629, %v36
    %v1632 = vadd.f32 %v1630, 1e-12
    %v1633 = vadd.f32 %v1631, 1e-12
    %v1634 = vrsqrt.pop %v1632
    %v1635 = vrsqrt.pop %v1633
    %v1636 = vmul.f32 %v1620, %v1634
    %v1637 = vmul.f32 %v1621, %v1635
    %v1638 = vlaneseq
    %v1639 = vshrl.u32 %v1638, 7
    %v1640 = vsub.s32 2, %v1639
    %v1641 = vrot.slane %v964, %v1640
    %v1642 = vmul.f32 %v1636, %v1641
    %v1643 = vmul.f32 %v1637, %v1641
    %v1644 = vlaneseq
    %v1645 = vshrl.u32 %v1644, 7
    %v1646 = vsub.s32 3, %v1645
    %v1647 = vrot.slane %v964, %v1646
    %v1648 = vadd.f32 %v1642, %v1647
    %v1649 = vadd.f32 %v1643, %v1647
    %v1650 = vpack.c.bf16 %v1649, %v1648
    %v1651 = vlaneseq
    %v1652 = vshrl.u32 %v1651, 7
    %v1653 = vsub.s32 4, %v1652
    %v1654 = vrot.slane %v964, %v1653
    %v1659 = vunpack.c.l.b16 %v971
    %v1660 = vunpack.c.l.b16 %v972
    %v1661 = vunpack.c.l.b16 %v973
    %v1662 = vunpack.c.l.b16 %v974
    %v1663 = vpack.c.b16 %v1660, %v1659
    %v1664 = vpack.c.b16 %v1662, %v1661
    %v1668 = vsel %vm29, %v1650, 0
    %1670 = vmatprep.subr.bf16.mxu0 0
    %1671 = vmatpush1.bf16.msra.mxu0 0
    %1672 = vmatprep.subr.bf16.mxu0 0
    %1673 = vmatpush1.bf16.msra.mxu0 0
    %1674 = vmatprep.subr.bf16.mxu0 0
    %1675 = vmatpush1.bf16.msra.mxu0 0
    %1676 = vmatprep.subr.bf16.mxu0 0
    %1677 = vmatpush1.bf16.msra.mxu0 0
    %1678 = vmatprep.subr.bf16.mxu0 0
    %1679 = vmatpush1.bf16.msra.mxu0 0
    %1680 = vmatprep.subr.bf16.mxu0 0
    %1681 = vmatpush1.bf16.msra.mxu0 0
    %1682 = vmatprep.subr.bf16.mxu0 0
    %1683 = vmatpush1.bf16.msra.mxu0 %v1664
    %1684 = vmatprep.subr.bf16.mxu0 0
    %1685 = vmatpush1.bf16.msra.mxu0 %v1663
    %1686 = vmatprep.subr.bf16.mxu0 0
    %1687 = vmatpush2.bf16.msra.mxu0 0
    %1688 = vmatprep.subr.bf16.mxu0 0
    %1689 = vmatpush2.bf16.msra.mxu0 0
    %1690 = vmatprep.subr.bf16.mxu0 0
    %1691 = vmatpush2.bf16.msra.mxu0 0
    %1692 = vmatprep.subr.bf16.mxu0 0
    %1693 = vmatpush2.bf16.msra.mxu0 0
    %1694 = vmatprep.subr.bf16.mxu0 0
    %1695 = vmatpush2.bf16.msra.mxu0 0
    %1696 = vmatprep.subr.bf16.mxu0 0
    %1697 = vmatpush2.bf16.msra.mxu0 0
    %1698 = vmatprep.subr.bf16.mxu0 0
    %1699 = vmatpush2.bf16.msra.mxu0 0
    %1700 = vmatprep.subr.bf16.mxu0 0
    %1701 = vmatpush2.bf16.msra.mxu0 0
    %1702 = vmatprep.mubr.bf16.mxu0 0
    %1703 = vmatmul.mubr.bf16.gmra.mxu0 %v1668
    %v1704 = vpop.f32.mrf.mxu0
    %v1705 = vadd.f32 %v1654, %v1704
    %v1706 = vpop.f32.mrf.mxu0
    %v1707 = vpop.f32.mrf.mxu0
    %v1708 = vadd.f32 %v1654, %v1707
    %v1709 = vpop.f32.mrf.mxu0
    %1710 = vdwg.mxu0
    %v1711 = vmul.f32 %v1705, %v1705
    %v1712 = vmul.f32 %v1708, %v1708
    %v1713 = vmul.f32 %v1705, %v1711
    %v1714 = vmul.f32 %v1708, %v1712
    %v1715 = vmul.f32 %v1713, 0.044715
    %v1716 = vmul.f32 %v1714, 0.044715
    %v1717 = vadd.f32 %v1705, %v1715
    %v1718 = vadd.f32 %v1708, %v1716
    %v1719 = vmul.f32 %v1717, 0.7978846
    %v1720 = vmul.f32 %v1718, 0.7978846
    %v1721 = vtanh.pop %v1719
    %v1722 = vtanh.pop %v1720
    %v1723 = vadd.f32 %v1721, 1.0
    %v1724 = vadd.f32 %v1722, 1.0
    %v1725 = vmul.f32 %v1723, 0.5
    %v1726 = vmul.f32 %v1724, 0.5
    %v1727 = vmul.f32 %v1705, %v1725
    %v1728 = vmul.f32 %v1708, %v1726
    %v1729 = vpack.c.bf16 %v1728, %v1727
    %v1730 = vlaneseq
    %v1731 = vshrl.u32 %v1730, 7
    %v1732 = vsub.s32 5, %v1731
    %v1733 = vrot.slane %v964, %v1732
    %v1742 = vunpack.c.l.b16 %v975
    %v1743 = vunpack.c.l.b16 %v976
    %v1744 = vunpack.c.l.b16 %v977
    %v1745 = vunpack.c.l.b16 %v978
    %v1746 = vunpack.c.l.b16 %v979
    %v1747 = vunpack.c.l.b16 %v980
    %v1748 = vunpack.c.l.b16 %v981
    %v1749 = vunpack.c.l.b16 %v982
    %v1750 = vpack.c.b16 %v1743, %v1742
    %v1751 = vpack.c.b16 %v1745, %v1744
    %v1752 = vpack.c.b16 %v1747, %v1746
    %v1753 = vpack.c.b16 %v1749, %v1748
    %v1759 = vsel %vm878, %v1729, 0
    %1761 = vmatprep.subr.bf16.mxu0 0
    %1762 = vmatpush1.bf16.msra.mxu0 0
    %1763 = vmatprep.subr.bf16.mxu0 0
    %1764 = vmatpush1.bf16.msra.mxu0 0
    %1765 = vmatprep.subr.bf16.mxu0 0
    %1766 = vmatpush1.bf16.msra.mxu0 0
    %1767 = vmatprep.subr.bf16.mxu0 0
    %1768 = vmatpush1.bf16.msra.mxu0 0
    %1769 = vmatprep.subr.bf16.mxu0 0
    %1770 = vmatpush1.bf16.msra.mxu0 %v1753
    %1771 = vmatprep.subr.bf16.mxu0 0
    %1772 = vmatpush1.bf16.msra.mxu0 %v1752
    %1773 = vmatprep.subr.bf16.mxu0 0
    %1774 = vmatpush1.bf16.msra.mxu0 %v1751
    %1775 = vmatprep.subr.bf16.mxu0 0
    %1776 = vmatpush1.bf16.msra.mxu0 %v1750
    %1777 = vmatprep.subr.bf16.mxu0 0
    %1778 = vmatpush2.bf16.msra.mxu0 0
    %1779 = vmatprep.subr.bf16.mxu0 0
    %1780 = vmatpush2.bf16.msra.mxu0 0
    %1781 = vmatprep.subr.bf16.mxu0 0
    %1782 = vmatpush2.bf16.msra.mxu0 0
    %1783 = vmatprep.subr.bf16.mxu0 0
    %1784 = vmatpush2.bf16.msra.mxu0 0
    %1785 = vmatprep.subr.bf16.mxu0 0
    %1786 = vmatpush2.bf16.msra.mxu0 0
    %1787 = vmatprep.subr.bf16.mxu0 0
    %1788 = vmatpush2.bf16.msra.mxu0 0
    %1789 = vmatprep.subr.bf16.mxu0 0
    %1790 = vmatpush2.bf16.msra.mxu0 0
    %1791 = vmatprep.subr.bf16.mxu0 0
    %1792 = vmatpush2.bf16.msra.mxu0 0
    %1793 = vmatprep.mubr.bf16.mxu0 0
    %1794 = vmatmul.mubr.bf16.gmra.mxu0 %v1759
    %v1795 = vpop.f32.mrf.mxu0
    %v1796 = vadd.f32 %v1733, %v1795
    %v1797 = vpop.f32.mrf.mxu0
    %v1798 = vpop.f32.mrf.mxu0
    %v1799 = vadd.f32 %v1733, %v1798
    %v1800 = vpop.f32.mrf.mxu0
    %1801 = vdwg.mxu0
    %v1802 = vadd.f32 %v1648, %v1796
    %v1803 = vadd.f32 %v1649, %v1799
    %v1804 = vsel %vm29, %v1802, 0.0
    %1805 = vadd.xlane.f32.xlu0 %v1804
    %v1806 = vpop.xlane.xlu0 %1805
    %v1807 = vsel %vm29, %v1803, 0.0
    %1808 = vadd.xlane.f32.xlu0 %v1807
    %v1809 = vpop.xlane.xlu0 %1808
    %v1810 = vmul.f32 %v1806, %v36
    %v1811 = vmul.f32 %v1809, %v36
    %v1812 = vsub.f32 %v1802, %v1810
    %v1813 = vsub.f32 %v1803, %v1811
    %v1814 = vmul.f32 %v1812, %v1812
    %v1815 = vmul.f32 %v1813, %v1813
    %v1816 = vsel %vm29, %v1814, 0.0
    %1817 = vadd.xlane.f32.xlu0 %v1816
    %v1818 = vpop.xlane.xlu0 %1817
    %v1819 = vsel %vm29, %v1815, 0.0
    %1820 = vadd.xlane.f32.xlu0 %v1819
    %v1821 = vpop.xlane.xlu0 %1820
    %v1822 = vmul.f32 %v1818, %v36
    %v1823 = vmul.f32 %v1821, %v36
    %v1824 = vadd.f32 %v1822, 1e-12
    %v1825 = vadd.f32 %v1823, 1e-12
    %v1826 = vrsqrt.pop %v1824
    %v1827 = vrsqrt.pop %v1825
    %v1828 = vmul.f32 %v1812, %v1826
    %v1829 = vmul.f32 %v1813, %v1827
    %v1830 = vlaneseq
    %v1831 = vshrl.u32 %v1830, 7
    %v1832 = vsub.s32 6, %v1831
    %v1833 = vrot.slane %v964, %v1832
    %v1834 = vmul.f32 %v1828, %v1833
    %v1835 = vmul.f32 %v1829, %v1833
    %v1836 = vlaneseq
    %v1837 = vshrl.u32 %v1836, 7
    %v1838 = vsub.s32 7, %v1837
    %v1839 = vrot.slane %v964, %v1838
    %v1840 = vadd.f32 %v1834, %v1839
    %v1841 = vadd.f32 %v1835, %v1839
    %v1844 = vrot.slane %v1841, 7
    %vm1845 = vcmask 1041409
    %v1846 = vsel %vm1845, %v1844, %v1840
    %v1848 = vrot.slane %v1840, 1
    %v1849 = vsel %vm1845, %v1841, %v1848
    %1850 = vrot.lane.b32.xlu0 %v1849, 32
    %v1851 = vpop.permute.xlu0 %1850
    %v1853 = vrot.slane %v1840, 2
    %v1854 = vrot.slane %v1841, 1
    %v1855 = vsel %vm1845, %v1854, %v1853
    %1856 = vrot.lane.b32.xlu0 %v1855, 64
    %v1857 = vpop.permute.xlu0 %1856
    %v1859 = vrot.slane %v1840, 3
    %v1860 = vrot.slane %v1841, 2
    %v1861 = vsel %vm1845, %v1860, %v1859
    %1862 = vrot.lane.b32.xlu0 %v1861, 96
    %v1863 = vpop.permute.xlu0 %1862
    %v1865 = vrot.slane %v1840, 4
    %v1866 = vrot.slane %v1841, 3
    %v1867 = vsel %vm1845, %v1866, %v1865
    %v1869 = vrot.slane %v1840, 5
    %v1870 = vrot.slane %v1841, 4
    %v1871 = vsel %vm1845, %v1870, %v1869
    %1872 = vrot.lane.b32.xlu0 %v1871, 32
    %v1873 = vpop.permute.xlu0 %1872
    %v1875 = vrot.slane %v1840, 6
    %v1876 = vrot.slane %v1841, 5
    %v1877 = vsel %vm1845, %v1876, %v1875
    %1878 = vrot.lane.b32.xlu0 %v1877, 64
    %v1879 = vpop.permute.xlu0 %1878
    %v1881 = vrot.slane %v1840, 7
    %v1882 = vrot.slane %v1841, 6
    %v1883 = vsel %vm1845, %v1882, %v1881
    %1884 = vrot.lane.b32.xlu0 %v1883, 96
    %v1885 = vpop.permute.xlu0 %1884
    %v1887 = vsel %vm29, %v1846, %v1851
    %v1888 = vsel %vm878, %v1887, %v1857
    %vm1889 = vcmask 785408
    %v1890 = vsel %vm1889, %v1888, %v1863
    %v1891 = vsel %vm29, %v1867, %v1873
    %v1892 = vsel %vm878, %v1891, %v1879
    %v1893 = vsel %vm1889, %v1892, %v1885
    %v1894 = vpack.c.bf16 %v1890, %v1890
    %v1895 = vpack.c.bf16 %v1893, %v1893
    %v1896 = vld [vmem:[%s5] sm:$0xf]
    %v1897 = vld [vmem:[%s5 + $0x4] sm:$0xf]
    %v1898 = vld [vmem:[%s5 + $0x8] sm:$0xf]
    %v1899 = vld [vmem:[%s5 + $0xc] sm:$0xf]
    %v1900 = vld [vmem:[%s5 + $0x10] sm:$0xf]
    %v1901 = vld [vmem:[%s5 + $0x14] sm:$0xf]
    %v1902 = vld [vmem:[%s5 + $0x18] sm:$0xf]
    %v1903 = vld [vmem:[%s5 + $0x1c] sm:$0xf]
    %v1904 = vld [vmem:[%s5 + $0x20] sm:$0xf]
    %v1905 = vld [vmem:[%s5 + $0x24] sm:$0xf]
    %v1906 = vld [vmem:[%s5 + $0x28] sm:$0xf]
    %v1907 = vld [vmem:[%s5 + $0x2c] sm:$0xf]
    %v1908 = vld [vmem:[%s5 + $0x30] sm:$0xf]
    %v1909 = vld [vmem:[%s5 + $0x34] sm:$0xf]
    %v1910 = vld [vmem:[%s5 + $0x38] sm:$0xf]
    %v1911 = vld [vmem:[%s5 + $0x3c] sm:$0xf]
    %v1912 = vld [vmem:[%s5 + $0x40] sm:$0xf]
    %v1913 = vld [vmem:[%s5 + $0x44] sm:$0xf]
    %v1914 = vld [vmem:[%s5 + $0x48] sm:$0xf]
    %v1915 = vld [vmem:[%s5 + $0x4c] sm:$0xf]
    %v1916 = vld [vmem:[%s5 + $0x50] sm:$0xf]
    %v1917 = vld [vmem:[%s5 + $0x54] sm:$0xf]
    %v1918 = vld [vmem:[%s5 + $0x58] sm:$0xf]
    %v1919 = vld [vmem:[%s5 + $0x5c] sm:$0xf]
    %v1920 = vld [vmem:[%s5 + $0x60] sm:$0xf]
    %v1921 = vld [vmem:[%s5 + $0x64] sm:$0xf]
    %v1922 = vld [vmem:[%s5 + $0x68] sm:$0xf]
    %v1923 = vld [vmem:[%s5 + $0x6c] sm:$0xf]
    %v1924 = vld [vmem:[%s5 + $0x70] sm:$0xf]
    %v1925 = vld [vmem:[%s5 + $0x74] sm:$0xf]
    %v1926 = vld [vmem:[%s5 + $0x78] sm:$0xf]
    %v1927 = vld [vmem:[%s5 + $0x7c] sm:$0xf]
    %v1928 = vlaneseq
    %v1929 = vshrl.u32 %v1928, 7
    %v1930 = vsub.s32 2, %v1929
    %v1931 = vrot.slane %v26, %v1930
    %v1964 = vunpack.c.l.b16 %v1896
    %v1965 = vunpack.c.l.b16 %v1897
    %v1966 = vunpack.c.l.b16 %v1898
    %v1967 = vunpack.c.l.b16 %v1899
    %v1968 = vunpack.c.l.b16 %v1900
    %v1969 = vunpack.c.l.b16 %v1901
    %v1970 = vunpack.c.l.b16 %v1902
    %v1971 = vunpack.c.l.b16 %v1903
    %v1972 = vunpack.c.l.b16 %v1904
    %v1973 = vunpack.c.l.b16 %v1905
    %v1974 = vunpack.c.l.b16 %v1906
    %v1975 = vunpack.c.l.b16 %v1907
    %v1976 = vunpack.c.l.b16 %v1908
    %v1977 = vunpack.c.l.b16 %v1909
    %v1978 = vunpack.c.l.b16 %v1910
    %v1979 = vunpack.c.l.b16 %v1911
    %v1980 = vunpack.c.l.b16 %v1912
    %v1981 = vunpack.c.l.b16 %v1913
    %v1982 = vunpack.c.l.b16 %v1914
    %v1983 = vunpack.c.l.b16 %v1915
    %v1984 = vunpack.c.l.b16 %v1916
    %v1985 = vunpack.c.l.b16 %v1917
    %v1986 = vunpack.c.l.b16 %v1918
    %v1987 = vunpack.c.l.b16 %v1919
    %v1988 = vunpack.c.l.b16 %v1920
    %v1989 = vunpack.c.l.b16 %v1921
    %v1990 = vunpack.c.l.b16 %v1922
    %v1991 = vunpack.c.l.b16 %v1923
    %v1992 = vunpack.c.l.b16 %v1924
    %v1993 = vunpack.c.l.b16 %v1925
    %v1994 = vunpack.c.l.b16 %v1926
    %v1995 = vunpack.c.l.b16 %v1927
    %v1996 = vpack.c.b16 %v1965, %v1964
    %v1997 = vpack.c.b16 %v1967, %v1966
    %v1998 = vpack.c.b16 %v1969, %v1968
    %v1999 = vpack.c.b16 %v1971, %v1970
    %v2000 = vpack.c.b16 %v1973, %v1972
    %v2001 = vpack.c.b16 %v1975, %v1974
    %v2002 = vpack.c.b16 %v1977, %v1976
    %v2003 = vpack.c.b16 %v1979, %v1978
    %v2004 = vpack.c.b16 %v1981, %v1980
    %v2005 = vpack.c.b16 %v1983, %v1982
    %v2006 = vpack.c.b16 %v1985, %v1984
    %v2007 = vpack.c.b16 %v1987, %v1986
    %v2008 = vpack.c.b16 %v1989, %v1988
    %v2009 = vpack.c.b16 %v1991, %v1990
    %v2010 = vpack.c.b16 %v1993, %v1992
    %v2011 = vpack.c.b16 %v1995, %v1994
    %2028 = vmatprep.subr.bf16.mxu0 0
    %2029 = vmatpush1.bf16.msra.mxu0 %v2003
    %2030 = vmatprep.subr.bf16.mxu0 0
    %2031 = vmatpush1.bf16.msra.mxu0 %v2002
    %2032 = vmatprep.subr.bf16.mxu0 0
    %2033 = vmatpush1.bf16.msra.mxu0 %v2001
    %2034 = vmatprep.subr.bf16.mxu0 0
    %2035 = vmatpush1.bf16.msra.mxu0 %v2000
    %2036 = vmatprep.subr.bf16.mxu0 0
    %2037 = vmatpush1.bf16.msra.mxu0 %v1999
    %2038 = vmatprep.subr.bf16.mxu0 0
    %2039 = vmatpush1.bf16.msra.mxu0 %v1998
    %2040 = vmatprep.subr.bf16.mxu0 0
    %2041 = vmatpush1.bf16.msra.mxu0 %v1997
    %2042 = vmatprep.subr.bf16.mxu0 0
    %2043 = vmatpush1.bf16.msra.mxu0 %v1996
    %2044 = vmatprep.subr.bf16.mxu0 0
    %2045 = vmatpush2.bf16.msra.mxu0 %v2011
    %2046 = vmatprep.subr.bf16.mxu0 0
    %2047 = vmatpush2.bf16.msra.mxu0 %v2010
    %2048 = vmatprep.subr.bf16.mxu0 0
    %2049 = vmatpush2.bf16.msra.mxu0 %v2009
    %2050 = vmatprep.subr.bf16.mxu0 0
    %2051 = vmatpush2.bf16.msra.mxu0 %v2008
    %2052 = vmatprep.subr.bf16.mxu0 0
    %2053 = vmatpush2.bf16.msra.mxu0 %v2007
    %2054 = vmatprep.subr.bf16.mxu0 0
    %2055 = vmatpush2.bf16.msra.mxu0 %v2006
    %2056 = vmatprep.subr.bf16.mxu0 0
    %2057 = vmatpush2.bf16.msra.mxu0 %v2005
    %2058 = vmatprep.subr.bf16.mxu0 0
    %2059 = vmatpush2.bf16.msra.mxu0 %v2004
    %2060 = vmatprep.mubr.bf16.mxu0 %v1895
    %2061 = vmatmul.mubr.bf16.gmra.mxu0 %v1894
    %v2062 = vpop.f32.mrf.mxu0
    %v2063 = vadd.f32 %v1931, %v2062
    %v2064 = vpop.f32.mrf.mxu0
    %v2065 = vpop.f32.mrf.mxu0
    %v2066 = vpop.f32.mrf.mxu0
    %2067 = vdwg.mxu0
    %v2068 = vpack.c.bf16 %v2063, %v2063
    %v2069 = vld [vmem:[%s5 + $0x80] sm:$0xf]
    %v2070 = vld [vmem:[%s5 + $0x84] sm:$0xf]
    %v2071 = vld [vmem:[%s5 + $0x88] sm:$0xf]
    %v2072 = vld [vmem:[%s5 + $0x8c] sm:$0xf]
    %v2073 = vlaneseq
    %v2074 = vshrl.u32 %v2073, 7
    %v2075 = vsub.s32 3, %v2074
    %v2076 = vrot.slane %v26, %v2075
    %v2081 = vunpack.c.l.b16 %v2069
    %v2082 = vunpack.c.l.b16 %v2070
    %v2083 = vunpack.c.l.b16 %v2071
    %v2084 = vunpack.c.l.b16 %v2072
    %v2085 = vpack.c.b16 %v2082, %v2081
    %v2086 = vpack.c.b16 %v2084, %v2083
    %v2090 = vsel %vm29, %v2068, 0
    %2092 = vmatprep.subr.bf16.mxu0 0
    %2093 = vmatpush1.bf16.msra.mxu0 0
    %2094 = vmatprep.subr.bf16.mxu0 0
    %2095 = vmatpush1.bf16.msra.mxu0 0
    %2096 = vmatprep.subr.bf16.mxu0 0
    %2097 = vmatpush1.bf16.msra.mxu0 0
    %2098 = vmatprep.subr.bf16.mxu0 0
    %2099 = vmatpush1.bf16.msra.mxu0 0
    %2100 = vmatprep.subr.bf16.mxu0 0
    %2101 = vmatpush1.bf16.msra.mxu0 0
    %2102 = vmatprep.subr.bf16.mxu0 0
    %2103 = vmatpush1.bf16.msra.mxu0 0
    %2104 = vmatprep.subr.bf16.mxu0 0
    %2105 = vmatpush1.bf16.msra.mxu0 %v2086
    %2106 = vmatprep.subr.bf16.mxu0 0
    %2107 = vmatpush1.bf16.msra.mxu0 %v2085
    %2108 = vmatprep.subr.bf16.mxu0 0
    %2109 = vmatpush2.bf16.msra.mxu0 0
    %2110 = vmatprep.subr.bf16.mxu0 0
    %2111 = vmatpush2.bf16.msra.mxu0 0
    %2112 = vmatprep.subr.bf16.mxu0 0
    %2113 = vmatpush2.bf16.msra.mxu0 0
    %2114 = vmatprep.subr.bf16.mxu0 0
    %2115 = vmatpush2.bf16.msra.mxu0 0
    %2116 = vmatprep.subr.bf16.mxu0 0
    %2117 = vmatpush2.bf16.msra.mxu0 0
    %2118 = vmatprep.subr.bf16.mxu0 0
    %2119 = vmatpush2.bf16.msra.mxu0 0
    %2120 = vmatprep.subr.bf16.mxu0 0
    %2121 = vmatpush2.bf16.msra.mxu0 0
    %2122 = vmatprep.subr.bf16.mxu0 0
    %2123 = vmatpush2.bf16.msra.mxu0 0
    %2124 = vmatprep.mubr.bf16.mxu0 0
    %2125 = vmatmul.mubr.bf16.gmra.mxu0 %v2090
    %v2126 = vpop.f32.mrf.mxu0
    %v2127 = vadd.f32 %v2076, %v2126
    %v2128 = vpop.f32.mrf.mxu0
    %v2129 = vpop.f32.mrf.mxu0
    %v2130 = vpop.f32.mrf.mxu0
    %2131 = vdwg.mxu0
    %vm2132 = vcmask 17408
    %v2133 = vsel %vm2132, %v2127, -inf
    %2134 = vmax.xlane.f32.xlu0 %v2133
    %v2135 = vpop.xlane.xlu0 %2134
    %v2136 = vsub.f32 %v2127, %v2135
    %v2137 = vmul.f32 %v2136, 1.442695
    %v2138 = vpow.pop %v2137
    %v2139 = vsel %vm2132, %v2138, 0.0
    %2140 = vadd.xlane.f32.xlu0 %v2139
    %v2141 = vpop.xlane.xlu0 %2140
    %v2142 = vrcp.pop %v2141
    %v2143 = vmul.f32 %v2138, %v2142
    %2144 = vst.msk [vmem:[#allocation2] sm:$0x3] %vm2132, %v2143
    // Predicated region
    $region26: #{tpu_custom_call.1} parent=1 // pred_check
      _
    $region27: #{tpu_custom_call.1} parent=1 // pred_check_branch
      %2146 = sbr.rel (0) target = $region29
    $region28: #{tpu_custom_call.1} parent=1 // pred_region
      %s2148 = ssub.s32 32, 32
      %2149 = vsyncadd [#allocation3], %s2148
      %s2151 = sshll.u32 [#allocation2], 4
      %s2152 = int_to_ptr.vmem [resolvable:$true] %s2151
      %2154 = dma.vmem_to_hbm [thread:$0]  %s2152, 32, %s6, [#allocation3]
    $region29: #{tpu_custom_call.1} parent=1 // pred_fallthru
      _
    // Predicated region
    $region30: #{tpu_custom_call.1} parent=1 // pred_check
      _
    $region31: #{tpu_custom_call.1} parent=1 // pred_check_branch
      %2156 = sbr.rel (0) target = $region33
    $region32: #{tpu_custom_call.1} parent=1 // pred_region
      %2157 = dma.done [#allocation3], 32
    $region33: #{tpu_custom_call.1} parent=1 // pred_fallthru
      _
    %2158 = vsyncpa [#allocation3], 1

</llo_original>
